<compile_context>
chip_gen: v5e
topology: v5e:2x2
jax: 0.10.0
libtpu: 0.0.40
codegen_flags: <defaults>
</compile_context>

<pallas_src>
import functools

import jax
import jax.numpy as jnp
from jax.experimental import pallas as pl
from jax.experimental.pallas import tpu as pltpu


_LANE = 128  # lane width used to make the output stores lane-dense


def _mm(a, b):
    """f32 matmul with f32 accumulation (MXU handles f32 operands fine)."""
    return jnp.dot(a, b, preferred_element_type=jnp.float32)


def _selection_constants(d, dtype):
    """In-kernel 0/1 constants for the lane-dense per-edge matvec.

    rsel (d, d*d):   rsel[i, k] = 1 iff k // d == i   (row-repeat of x_src)
    ssel (d*d, d):   ssel[k, j] = 1 iff k %  d == j   (strided column sum)
    Built without integer div/mod (range compares + vertical tile of eye).
    """
    row = jax.lax.broadcasted_iota(jnp.int32, (d, d * d), 0)
    col = jax.lax.broadcasted_iota(jnp.int32, (d, d * d), 1)
    rsel = jnp.logical_and(col >= row * d, col < (row + 1) * d).astype(dtype)
    eye = (jax.lax.broadcasted_iota(jnp.int32, (d, d), 0) ==
           jax.lax.broadcasted_iota(jnp.int32, (d, d), 1)).astype(dtype)
    ssel = jnp.concatenate([eye] * d, axis=0)
    return rsel, ssel


# --------------------------------------------------------------------------
# The whole forward on in-register/VMEM arrays.  Used both inside the Pallas
# kernel and (on plain arrays) as the pure-JAX reference.
# --------------------------------------------------------------------------

def _forward_math(x, edge_attr, src_oh, agg, member,
                  lin0_w, lin0_b, enn_w1, enn_b1, enn_w2, enn_b2, conv_b,
                  gru_wih, gru_whh, gru_bih, gru_bhh,
                  lstm_w_h, lstm_w_r, lstm_b, *, dim):
    f32 = jnp.float32
    d = dim

    rsel, ssel = _selection_constants(d, f32)          # hoisted, built once

    # out = relu(lin0(x)); h = out
    out = jnp.maximum(_mm(x, lin0_w) + lin0_b, 0.0)    # (N, d)
    h = out

    # Edge network Linear(5,128) -> ReLU -> Linear(128, d*d); computed once,
    # kept lane-dense as (E, d*d) (never reshaped to (E, d, d)).
    ehid = jnp.maximum(_mm(edge_attr, enn_w1) + enn_b1, 0.0)   # (E, 128)
    wflat = _mm(ehid, enn_w2) + enn_b2                         # (E, d*d)

    # 3 x (NNConv(mean, root_weight=False) + ReLU + GRU), statically unrolled.
    for _ in range(3):
        x_src = _mm(src_oh, out)                       # (E, d)   gather of src nodes
        # TODO(synk): at large E/d replace the rsel replication matmul with a
        # VPU lane-repeat of x_src to (E, d*d) to save the wasted MXU pushes.
        prod = _mm(x_src, rsel) * wflat                # (E, d*d) x_i * W_e[i, j]
        msg = _mm(prod, ssel)                          # (E, d)   per-edge x_src @ W_e
        m = jnp.maximum(_mm(agg, msg) + conv_b, 0.0)   # (N, d)   mean scatter + bias + relu
        # GRU step, split weights (no concat): gi = W_ih m, gh = W_hh h
        gi = _mm(m, gru_wih) + gru_bih                 # (N, 3d)  gates r|z|n
        gh = _mm(h, gru_whh) + gru_bhh                 # (N, 3d)
        r = jax.nn.sigmoid(gi[:, :d] + gh[:, :d])
        z = jax.nn.sigmoid(gi[:, d:2 * d] + gh[:, d:2 * d])
        n = jnp.tanh(gi[:, 2 * d:] + r * gh[:, 2 * d:])
        h = (1.0 - z) * n + z * h
        out = h
    feat = out                                         # feat_map[-1]

    # Set2Set(dim, processing_steps=3): fused LSTM + attention, unrolled.
    G = member.shape[0]
    featT = feat.T                                     # ONE transpose, reused 3x
    member_mask = member > 0.0
    big_neg = jnp.full_like(member, -1e30)

    c = jnp.zeros((G, d), f32)
    hq = jnp.zeros((G, d), f32)
    r_vec = jnp.zeros((G, d), f32)
    for _ in range(3):
        # LSTM input is q_star = [hq_prev, r_prev]; hq_prev == hidden state, so
        # W_ih[:d] has been folded into W_hh (lstm_w_h) exactly.  No concat.
        gates = _mm(hq, lstm_w_h) + _mm(r_vec, lstm_w_r) + lstm_b   # (G, 4d) i|f|g|o
        i_g = jax.nn.sigmoid(gates[:, :d])
        f_g = jax.nn.sigmoid(gates[:, d:2 * d])
        g_g = jnp.tanh(gates[:, 2 * d:3 * d])
        o_g = jax.nn.sigmoid(gates[:, 3 * d:])
        c = f_g * c + i_g * g_g
        hq = o_g * jnp.tanh(c)
        # Attention: e_n = <feat_n, q_{batch[n]}>, per-graph masked softmax.
        e = _mm(hq, featT)                             # (G, N)
        masked = jnp.where(member_mask, e, big_neg)
        mx = jnp.max(masked, axis=-1, keepdims=True)
        expo = jnp.exp(masked - mx) * member           # mask BEFORE exp: no inf*0
        denom = jnp.maximum(jnp.sum(expo, axis=-1, keepdims=True), 1e-20)
        a = expo / denom                               # (G, N)
        r_vec = _mm(a, feat)                           # (G, d) weighted readout
    return hq, r_vec, feat


def _pad_lanes(arr, width):
    pad = width - arr.shape[1]
    if pad == 0:
        return arr
    return jnp.concatenate(
        [arr, jnp.zeros((arr.shape[0], pad), arr.dtype)], axis=1)


def _sup_encoder_kernel(*refs, dim):
    in_refs = refs[:-2]
    qstar_ref, feat_ref = refs[-2], refs[-1]
    hq, r_vec, feat = _forward_math(*(r[...] for r in in_refs), dim=dim)
    # Lane-dense (128-wide) single full-width stores; wrapper slices padding off.
    qstar_ref[...] = _pad_lanes(jnp.concatenate([hq, r_vec], axis=1), _LANE)
    feat_ref[...] = _pad_lanes(feat, _LANE)


# --------------------------------------------------------------------------
# Parameters (deterministic synthetic init, PyTorch layout) + fused layouts.
# --------------------------------------------------------------------------

def make_params(key, num_features, dim):
    ks = jax.random.split(key, 15)

    def w(k, shape):
        return jax.random.normal(k, shape, jnp.float32) * 0.1

    return dict(
        lin0_w=w(ks[0], (num_features, dim)), lin0_b=w(ks[1], (1, dim)),
        # NNConv edge network: Linear(5,128) -> ReLU -> Linear(128, dim*dim)
        enn_w1=w(ks[2], (5, 128)), enn_b1=w(ks[3], (1, 128)),
        enn_w2=w(ks[4], (128, dim * dim)), enn_b2=w(ks[5], (1, dim * dim)),
        conv_b=w(ks[6], (1, dim)),                      # NNConv bias
        # GRU(dim, dim): weights stored transposed (in, 3*out), gate order r|z|n
        gru_wih=w(ks[7], (dim, 3 * dim)), gru_whh=w(ks[8], (dim, 3 * dim)),
        gru_bih=w(ks[9], (1, 3 * dim)), gru_bhh=w(ks[10], (1, 3 * dim)),
        # Set2Set LSTM(2*dim, dim): gate order i|f|g|o
        lstm_wih=w(ks[11], (2 * dim, 4 * dim)), lstm_whh=w(ks[12], (dim, 4 * dim)),
        lstm_bih=w(ks[13], (1, 4 * dim)), lstm_bhh=w(ks[14], (1, 4 * dim)),
    )


def fuse_params(p, dim):
    """Split the Set2Set LSTM weights into per-operand blocks (no in-kernel concat).

    The LSTM input is q_star = [hq_prev, r_prev] and hq_prev always equals the
    LSTM hidden state, so W_ih[:d] folds into W_hh exactly.
    """
    d = dim
    wih, whh = p['lstm_wih'], p['lstm_whh']
    return dict(lstm_w_h=wih[:d] + whh,                 # (d, 4d) acts on hq
                lstm_w_r=wih[d:],                       # (d, 4d) acts on r_vec
                lstm_b=p['lstm_bih'] + p['lstm_bhh'])   # (1, 4d)


def _glue(x, src, tgt, batch, num_graphs):
    """Dense gather/scatter/membership matrices (tiny demo sizes -> MXU friendly)."""
    # TODO(synk): for realistic N/E replace these O(N*E) one-hot matrices with
    # scalar-prefetched (SMEM) src/tgt/batch indices + an E-tiled gather /
    # segment-mean grid (PrefetchScalarGridSpec, "parallel" E-axis on v7x).
    N = x.shape[0]
    f32 = jnp.float32
    src_oh = jax.nn.one_hot(src, N, dtype=f32)                  # (E, N) gather
    tgt_oh = jax.nn.one_hot(tgt, N, dtype=f32)                  # (E, N)
    deg = jnp.sum(tgt_oh, axis=0)                               # (N,)
    agg = (tgt_oh / jnp.maximum(deg, 1.0)[None, :]).T           # (N, E) mean scatter
    member = jax.nn.one_hot(batch, num_graphs, dtype=f32).T     # (G, N)
    return src_oh, agg, member


# --------------------------------------------------------------------------
# Forward pass: ONE pallas_call, everything VMEM-resident.
# --------------------------------------------------------------------------

def sup_encoder_forward(params, x, src, tgt, edge_attr, batch, *, num_graphs, dim):
    assert 2 * dim <= _LANE, "demo assumes 2*dim <= 128 for the lane-dense output"
    N = x.shape[0]
    f32 = jnp.float32

    src_oh, agg, member = _glue(x, src, tgt, batch, num_graphs)
    fused = fuse_params(params, dim)

    inputs = (x, edge_attr, src_oh, agg, member,
              params['lin0_w'], params['lin0_b'],
              params['enn_w1'], params['enn_b1'],
              params['enn_w2'], params['enn_b2'],
              params['conv_b'],
              params['gru_wih'], params['gru_whh'],
              params['gru_bih'], params['gru_bhh'],
              fused['lstm_w_h'], fused['lstm_w_r'], fused['lstm_b'])

    vmem = functools.partial(pl.BlockSpec, memory_space=pltpu.MemorySpace.VMEM)
    q_pad, f_pad = pl.pallas_call(
        functools.partial(_sup_encoder_kernel, dim=dim),
        out_shape=(jax.ShapeDtypeStruct((num_graphs, _LANE), f32),
                   jax.ShapeDtypeStruct((N, _LANE), f32)),
        in_specs=[vmem() for _ in inputs],
        out_specs=(vmem(), vmem()),
        compiler_params=pltpu.CompilerParams(vmem_limit_bytes=32 * 1024 * 1024),
    )(*inputs)
    # Slice off the lane padding outside the kernel.
    return q_pad[:, :2 * dim], f_pad[:, :dim]


def sup_encoder_ref(params, x, src, tgt, edge_attr, batch, *, num_graphs, dim):
    """Pure-JAX reference using the exact same math (no Pallas)."""
    src_oh, agg, member = _glue(x, src, tgt, batch, num_graphs)
    fused = fuse_params(params, dim)
    hq, r_vec, feat = _forward_math(
        x, edge_attr, src_oh, agg, member,
        params['lin0_w'], params['lin0_b'],
        params['enn_w1'], params['enn_b1'],
        params['enn_w2'], params['enn_b2'], params['conv_b'],
        params['gru_wih'], params['gru_whh'], params['gru_bih'], params['gru_bhh'],
        fused['lstm_w_h'], fused['lstm_w_r'], fused['lstm_b'], dim=dim)
    return jnp.concatenate([hq, r_vec], axis=1), feat


# --------------------------------------------------------------------------
# Demo
# --------------------------------------------------------------------------

if __name__ == "__main__":
    num_features = 8
    dim = 16
    N = 12          # nodes (6 per graph)
    E = 24          # edges (12 per graph)
    G = 2           # graphs

    key = jax.random.PRNGKey(0)
    k_par, k_x, k_ea, k_s0, k_t0, k_s1, k_t1 = jax.random.split(key, 7)

    params = make_params(k_par, num_features, dim)

    x = jax.random.normal(k_x, (N, num_features), jnp.float32)
    edge_attr = jax.random.normal(k_ea, (E, 5), jnp.float32)
    # edges stay within their own graph (graph 0: nodes 0..5, graph 1: nodes 6..11)
    src = jnp.concatenate([jax.random.randint(k_s0, (E // 2,), 0, 6),
                           jax.random.randint(k_s1, (E // 2,), 6, 12)]).astype(jnp.int32)
    tgt = jnp.concatenate([jax.random.randint(k_t0, (E // 2,), 0, 6),
                           jax.random.randint(k_t1, (E // 2,), 6, 12)]).astype(jnp.int32)
    batch = jnp.array([0] * 6 + [1] * 6, dtype=jnp.int32)

    fwd = jax.jit(functools.partial(sup_encoder_forward, num_graphs=G, dim=dim))
    ref = jax.jit(functools.partial(sup_encoder_ref, num_graphs=G, dim=dim))

    q_star, feat = fwd(params, x, src, tgt, edge_attr, batch)
    jax.block_until_ready((q_star, feat))
    q_ref, f_ref = ref(params, x, src, tgt, edge_attr, batch)
    jax.block_until_ready((q_ref, f_ref))

    assert q_star.shape == (G, 2 * dim) and q_star.dtype == jnp.float32
    assert feat.shape == (N, dim) and feat.dtype == jnp.float32
    assert bool(jnp.all(jnp.isfinite(q_star))) and bool(jnp.all(jnp.isfinite(feat)))
    assert bool(jnp.allclose(q_star, q_ref, atol=1e-3, rtol=1e-3))
    assert bool(jnp.allclose(feat, f_ref, atol=1e-3, rtol=1e-3))
    print("KERNEL_OK")
</pallas_src>

<mosaic_0001>
module attributes {stable_mosaic.version = 11 : i64} {
  func.func @_sup_encoder_kernel(%arg0: memref<12x8xf32, #tpu.memory_space<vmem>>, %arg1: memref<24x5xf32, #tpu.memory_space<vmem>>, %arg2: memref<24x12xf32, #tpu.memory_space<vmem>>, %arg3: memref<12x24xf32, #tpu.memory_space<vmem>>, %arg4: memref<2x12xf32, #tpu.memory_space<vmem>>, %arg5: memref<8x16xf32, #tpu.memory_space<vmem>>, %arg6: memref<1x16xf32, #tpu.memory_space<vmem>>, %arg7: memref<5x128xf32, #tpu.memory_space<vmem>>, %arg8: memref<1x128xf32, #tpu.memory_space<vmem>>, %arg9: memref<128x256xf32, #tpu.memory_space<vmem>>, %arg10: memref<1x256xf32, #tpu.memory_space<vmem>>, %arg11: memref<1x16xf32, #tpu.memory_space<vmem>>, %arg12: memref<16x48xf32, #tpu.memory_space<vmem>>, %arg13: memref<16x48xf32, #tpu.memory_space<vmem>>, %arg14: memref<1x48xf32, #tpu.memory_space<vmem>>, %arg15: memref<1x48xf32, #tpu.memory_space<vmem>>, %arg16: memref<16x64xf32, #tpu.memory_space<vmem>>, %arg17: memref<16x64xf32, #tpu.memory_space<vmem>>, %arg18: memref<1x64xf32, #tpu.memory_space<vmem>>, %arg19: memref<2x128xf32, #tpu.memory_space<vmem>>, %arg20: memref<12x128xf32, #tpu.memory_space<vmem>>) attributes {dimension_semantics = [], scalar_prefetch = 0 : i64, scratch_operands = 0 : i64, tpu.core_type = #tpu.core_type<tc>} {
    %c0 = arith.constant 0 : index
    %c0_0 = arith.constant 0 : index
    %0 = vector.load %arg0[%c0, %c0_0] : memref<12x8xf32, #tpu.memory_space<vmem>>, vector<12x8xf32>
    %c0_1 = arith.constant 0 : index
    %c0_2 = arith.constant 0 : index
    %1 = vector.load %arg1[%c0_1, %c0_2] : memref<24x5xf32, #tpu.memory_space<vmem>>, vector<24x5xf32>
    %c0_3 = arith.constant 0 : index
    %c0_4 = arith.constant 0 : index
    %2 = vector.load %arg2[%c0_3, %c0_4] : memref<24x12xf32, #tpu.memory_space<vmem>>, vector<24x12xf32>
    %c0_5 = arith.constant 0 : index
    %c0_6 = arith.constant 0 : index
    %3 = vector.load %arg3[%c0_5, %c0_6] : memref<12x24xf32, #tpu.memory_space<vmem>>, vector<12x24xf32>
    %c0_7 = arith.constant 0 : index
    %c0_8 = arith.constant 0 : index
    %4 = vector.load %arg4[%c0_7, %c0_8] : memref<2x12xf32, #tpu.memory_space<vmem>>, vector<2x12xf32>
    %c0_9 = arith.constant 0 : index
    %c0_10 = arith.constant 0 : index
    %5 = vector.load %arg5[%c0_9, %c0_10] : memref<8x16xf32, #tpu.memory_space<vmem>>, vector<8x16xf32>
    %c0_11 = arith.constant 0 : index
    %c0_12 = arith.constant 0 : index
    %6 = vector.load %arg6[%c0_11, %c0_12] : memref<1x16xf32, #tpu.memory_space<vmem>>, vector<1x16xf32>
    %c0_13 = arith.constant 0 : index
    %c0_14 = arith.constant 0 : index
    %7 = vector.load %arg7[%c0_13, %c0_14] : memref<5x128xf32, #tpu.memory_space<vmem>>, vector<5x128xf32>
    %c0_15 = arith.constant 0 : index
    %c0_16 = arith.constant 0 : index
    %8 = vector.load %arg8[%c0_15, %c0_16] : memref<1x128xf32, #tpu.memory_space<vmem>>, vector<1x128xf32>
    %c0_17 = arith.constant 0 : index
    %c0_18 = arith.constant 0 : index
    %9 = vector.load %arg9[%c0_17, %c0_18] : memref<128x256xf32, #tpu.memory_space<vmem>>, vector<128x256xf32>
    %c0_19 = arith.constant 0 : index
    %c0_20 = arith.constant 0 : index
    %10 = vector.load %arg10[%c0_19, %c0_20] : memref<1x256xf32, #tpu.memory_space<vmem>>, vector<1x256xf32>
    %c0_21 = arith.constant 0 : index
    %c0_22 = arith.constant 0 : index
    %11 = vector.load %arg11[%c0_21, %c0_22] : memref<1x16xf32, #tpu.memory_space<vmem>>, vector<1x16xf32>
    %c0_23 = arith.constant 0 : index
    %c0_24 = arith.constant 0 : index
    %12 = vector.load %arg12[%c0_23, %c0_24] : memref<16x48xf32, #tpu.memory_space<vmem>>, vector<16x48xf32>
    %c0_25 = arith.constant 0 : index
    %c0_26 = arith.constant 0 : index
    %13 = vector.load %arg13[%c0_25, %c0_26] : memref<16x48xf32, #tpu.memory_space<vmem>>, vector<16x48xf32>
    %c0_27 = arith.constant 0 : index
    %c0_28 = arith.constant 0 : index
    %14 = vector.load %arg14[%c0_27, %c0_28] : memref<1x48xf32, #tpu.memory_space<vmem>>, vector<1x48xf32>
    %c0_29 = arith.constant 0 : index
    %c0_30 = arith.constant 0 : index
    %15 = vector.load %arg15[%c0_29, %c0_30] : memref<1x48xf32, #tpu.memory_space<vmem>>, vector<1x48xf32>
    %c0_31 = arith.constant 0 : index
    %c0_32 = arith.constant 0 : index
    %16 = vector.load %arg16[%c0_31, %c0_32] : memref<16x64xf32, #tpu.memory_space<vmem>>, vector<16x64xf32>
    %c0_33 = arith.constant 0 : index
    %c0_34 = arith.constant 0 : index
    %17 = vector.load %arg17[%c0_33, %c0_34] : memref<16x64xf32, #tpu.memory_space<vmem>>, vector<16x64xf32>
    %c0_35 = arith.constant 0 : index
    %c0_36 = arith.constant 0 : index
    %18 = vector.load %arg18[%c0_35, %c0_36] : memref<1x64xf32, #tpu.memory_space<vmem>>, vector<1x64xf32>
    %19 = tpu.iota {dimensions = array<i32: 0>} : vector<16x256xi32>
    %20 = tpu.iota {dimensions = array<i32: 1>} : vector<16x256xi32>
    %c16_i32 = arith.constant 16 : i32
    %21 = vector.broadcast %c16_i32 : i32 to vector<16x256xi32>
    %22 = arith.muli %19, %21 : vector<16x256xi32>
    %23 = arith.cmpi sge, %20, %22 : vector<16x256xi32>
    %c1_i32 = arith.constant 1 : i32
    %24 = vector.broadcast %c1_i32 : i32 to vector<16x256xi32>
    %25 = arith.addi %19, %24 : vector<16x256xi32>
    %c16_i32_37 = arith.constant 16 : i32
    %26 = vector.broadcast %c16_i32_37 : i32 to vector<16x256xi32>
    %27 = arith.muli %25, %26 : vector<16x256xi32>
    %28 = arith.cmpi slt, %20, %27 : vector<16x256xi32>
    %29 = arith.andi %23, %28 : vector<16x256xi1>
    %30 = arith.extui %29 : vector<16x256xi1> to vector<16x256xi32>
    %31 = arith.sitofp %30 : vector<16x256xi32> to vector<16x256xf32>
    %32 = tpu.iota {dimensions = array<i32: 0>} : vector<16x16xi32>
    %33 = tpu.iota {dimensions = array<i32: 1>} : vector<16x16xi32>
    %34 = arith.cmpi eq, %32, %33 : vector<16x16xi32>
    %35 = arith.extui %34 : vector<16x16xi1> to vector<16x16xi32>
    %36 = arith.sitofp %35 : vector<16x16xi32> to vector<16x16xf32>
    %37 = tpu.concatenate %36, %36, %36, %36, %36, %36, %36, %36, %36, %36, %36, %36, %36, %36, %36, %36 in 0 : vector<16x16xf32>, vector<16x16xf32>, vector<16x16xf32>, vector<16x16xf32>, vector<16x16xf32>, vector<16x16xf32>, vector<16x16xf32>, vector<16x16xf32>, vector<16x16xf32>, vector<16x16xf32>, vector<16x16xf32>, vector<16x16xf32>, vector<16x16xf32>, vector<16x16xf32>, vector<16x16xf32>, vector<16x16xf32> -> vector<256x16xf32>
    %cst = arith.constant dense<0.000000e+00> : vector<12x16xf32>
    %38 = tpu.matmul %0, %5, %cst {dimension_numbers = #tpu.dot_dimension_numbers<[1], [0], [0], [1], [0, 0, 1, 1], [], []>} : vector<12x8xf32>, vector<8x16xf32>, vector<12x16xf32> -> vector<12x16xf32>
    %39 = vector.broadcast %6 : vector<1x16xf32> to vector<12x16xf32>
    %40 = arith.addf %38, %39 : vector<12x16xf32>
    %cst_38 = arith.constant 0.000000e+00 : f32
    %41 = vector.broadcast %cst_38 : f32 to vector<12x16xf32>
    %42 = arith.maximumf %40, %41 : vector<12x16xf32>
    %cst_39 = arith.constant dense<0.000000e+00> : vector<24x128xf32>
    %43 = tpu.matmul %1, %7, %cst_39 {dimension_numbers = #tpu.dot_dimension_numbers<[1], [0], [0], [1], [0, 0, 1, 1], [], []>} : vector<24x5xf32>, vector<5x128xf32>, vector<24x128xf32> -> vector<24x128xf32>
    %44 = vector.broadcast %8 : vector<1x128xf32> to vector<24x128xf32>
    %45 = arith.addf %43, %44 : vector<24x128xf32>
    %cst_40 = arith.constant 0.000000e+00 : f32
    %46 = vector.broadcast %cst_40 : f32 to vector<24x128xf32>
    %47 = arith.maximumf %45, %46 : vector<24x128xf32>
    %cst_41 = arith.constant dense<0.000000e+00> : vector<24x256xf32>
    %48 = tpu.matmul %47, %9, %cst_41 {dimension_numbers = #tpu.dot_dimension_numbers<[1], [0], [0], [1], [0, 0, 1, 1], [], []>} : vector<24x128xf32>, vector<128x256xf32>, vector<24x256xf32> -> vector<24x256xf32>
    %49 = vector.broadcast %10 : vector<1x256xf32> to vector<24x256xf32>
    %50 = arith.addf %48, %49 : vector<24x256xf32>
    %cst_42 = arith.constant dense<0.000000e+00> : vector<24x16xf32>
    %51 = tpu.matmul %2, %42, %cst_42 {dimension_numbers = #tpu.dot_dimension_numbers<[1], [0], [0], [1], [0, 0, 1, 1], [], []>} : vector<24x12xf32>, vector<12x16xf32>, vector<24x16xf32> -> vector<24x16xf32>
    %cst_43 = arith.constant dense<0.000000e+00> : vector<24x256xf32>
    %52 = tpu.matmul %51, %31, %cst_43 {dimension_numbers = #tpu.dot_dimension_numbers<[1], [0], [0], [1], [0, 0, 1, 1], [], []>} : vector<24x16xf32>, vector<16x256xf32>, vector<24x256xf32> -> vector<24x256xf32>
    %53 = arith.mulf %52, %50 : vector<24x256xf32>
    %cst_44 = arith.constant dense<0.000000e+00> : vector<24x16xf32>
    %54 = tpu.matmul %53, %37, %cst_44 {dimension_numbers = #tpu.dot_dimension_numbers<[1], [0], [0], [1], [0, 0, 1, 1], [], []>} : vector<24x256xf32>, vector<256x16xf32>, vector<24x16xf32> -> vector<24x16xf32>
    %cst_45 = arith.constant dense<0.000000e+00> : vector<12x16xf32>
    %55 = tpu.matmul %3, %54, %cst_45 {dimension_numbers = #tpu.dot_dimension_numbers<[1], [0], [0], [1], [0, 0, 1, 1], [], []>} : vector<12x24xf32>, vector<24x16xf32>, vector<12x16xf32> -> vector<12x16xf32>
    %56 = vector.broadcast %11 : vector<1x16xf32> to vector<12x16xf32>
    %57 = arith.addf %55, %56 : vector<12x16xf32>
    %cst_46 = arith.constant 0.000000e+00 : f32
    %58 = vector.broadcast %cst_46 : f32 to vector<12x16xf32>
    %59 = arith.maximumf %57, %58 : vector<12x16xf32>
    %cst_47 = arith.constant dense<0.000000e+00> : vector<12x48xf32>
    %60 = tpu.matmul %59, %12, %cst_47 {dimension_numbers = #tpu.dot_dimension_numbers<[1], [0], [0], [1], [0, 0, 1, 1], [], []>} : vector<12x16xf32>, vector<16x48xf32>, vector<12x48xf32> -> vector<12x48xf32>
    %61 = vector.broadcast %14 : vector<1x48xf32> to vector<12x48xf32>
    %62 = arith.addf %60, %61 : vector<12x48xf32>
    %cst_48 = arith.constant dense<0.000000e+00> : vector<12x48xf32>
    %63 = tpu.matmul %42, %13, %cst_48 {dimension_numbers = #tpu.dot_dimension_numbers<[1], [0], [0], [1], [0, 0, 1, 1], [], []>} : vector<12x16xf32>, vector<16x48xf32>, vector<12x48xf32> -> vector<12x48xf32>
    %64 = vector.broadcast %15 : vector<1x48xf32> to vector<12x48xf32>
    %65 = arith.addf %63, %64 : vector<12x48xf32>
    %66 = vector.extract_strided_slice %62 {offsets = [0, 0], sizes = [12, 16], strides = [1, 1]} : vector<12x48xf32> to vector<12x16xf32>
    %67 = vector.extract_strided_slice %65 {offsets = [0, 0], sizes = [12, 16], strides = [1, 1]} : vector<12x48xf32> to vector<12x16xf32>
    %68 = arith.addf %66, %67 : vector<12x16xf32>
    %69 = arith.negf %68 : vector<12x16xf32>
    %70 = math.exp %69 : vector<12x16xf32>
    %cst_49 = arith.constant 1.000000e+00 : f32
    %71 = vector.broadcast %cst_49 : f32 to vector<12x16xf32>
    %72 = arith.addf %71, %70 : vector<12x16xf32>
    %73 = arith.divf %71, %72 : vector<12x16xf32>
    %74 = vector.extract_strided_slice %62 {offsets = [0, 16], sizes = [12, 16], strides = [1, 1]} : vector<12x48xf32> to vector<12x16xf32>
    %75 = vector.extract_strided_slice %65 {offsets = [0, 16], sizes = [12, 16], strides = [1, 1]} : vector<12x48xf32> to vector<12x16xf32>
    %76 = arith.addf %74, %75 : vector<12x16xf32>
    %77 = arith.negf %76 : vector<12x16xf32>
    %78 = math.exp %77 : vector<12x16xf32>
    %cst_50 = arith.constant 1.000000e+00 : f32
    %79 = vector.broadcast %cst_50 : f32 to vector<12x16xf32>
    %80 = arith.addf %79, %78 : vector<12x16xf32>
    %81 = arith.divf %79, %80 : vector<12x16xf32>
    %82 = vector.extract_strided_slice %62 {offsets = [0, 32], sizes = [12, 16], strides = [1, 1]} : vector<12x48xf32> to vector<12x16xf32>
    %83 = vector.extract_strided_slice %65 {offsets = [0, 32], sizes = [12, 16], strides = [1, 1]} : vector<12x48xf32> to vector<12x16xf32>
    %84 = arith.mulf %73, %83 : vector<12x16xf32>
    %85 = arith.addf %82, %84 : vector<12x16xf32>
    %86 = math.tanh %85 : vector<12x16xf32>
    %cst_51 = arith.constant 1.000000e+00 : f32
    %87 = vector.broadcast %cst_51 : f32 to vector<12x16xf32>
    %88 = arith.subf %87, %81 : vector<12x16xf32>
    %89 = arith.mulf %88, %86 : vector<12x16xf32>
    %90 = arith.mulf %81, %42 : vector<12x16xf32>
    %91 = arith.addf %89, %90 : vector<12x16xf32>
    %cst_52 = arith.constant dense<0.000000e+00> : vector<24x16xf32>
    %92 = tpu.matmul %2, %91, %cst_52 {dimension_numbers = #tpu.dot_dimension_numbers<[1], [0], [0], [1], [0, 0, 1, 1], [], []>} : vector<24x12xf32>, vector<12x16xf32>, vector<24x16xf32> -> vector<24x16xf32>
    %cst_53 = arith.constant dense<0.000000e+00> : vector<24x256xf32>
    %93 = tpu.matmul %92, %31, %cst_53 {dimension_numbers = #tpu.dot_dimension_numbers<[1], [0], [0], [1], [0, 0, 1, 1], [], []>} : vector<24x16xf32>, vector<16x256xf32>, vector<24x256xf32> -> vector<24x256xf32>
    %94 = arith.mulf %93, %50 : vector<24x256xf32>
    %cst_54 = arith.constant dense<0.000000e+00> : vector<24x16xf32>
    %95 = tpu.matmul %94, %37, %cst_54 {dimension_numbers = #tpu.dot_dimension_numbers<[1], [0], [0], [1], [0, 0, 1, 1], [], []>} : vector<24x256xf32>, vector<256x16xf32>, vector<24x16xf32> -> vector<24x16xf32>
    %cst_55 = arith.constant dense<0.000000e+00> : vector<12x16xf32>
    %96 = tpu.matmul %3, %95, %cst_55 {dimension_numbers = #tpu.dot_dimension_numbers<[1], [0], [0], [1], [0, 0, 1, 1], [], []>} : vector<12x24xf32>, vector<24x16xf32>, vector<12x16xf32> -> vector<12x16xf32>
    %97 = vector.broadcast %11 : vector<1x16xf32> to vector<12x16xf32>
    %98 = arith.addf %96, %97 : vector<12x16xf32>
    %cst_56 = arith.constant 0.000000e+00 : f32
    %99 = vector.broadcast %cst_56 : f32 to vector<12x16xf32>
    %100 = arith.maximumf %98, %99 : vector<12x16xf32>
    %cst_57 = arith.constant dense<0.000000e+00> : vector<12x48xf32>
    %101 = tpu.matmul %100, %12, %cst_57 {dimension_numbers = #tpu.dot_dimension_numbers<[1], [0], [0], [1], [0, 0, 1, 1], [], []>} : vector<12x16xf32>, vector<16x48xf32>, vector<12x48xf32> -> vector<12x48xf32>
    %102 = vector.broadcast %14 : vector<1x48xf32> to vector<12x48xf32>
    %103 = arith.addf %101, %102 : vector<12x48xf32>
    %cst_58 = arith.constant dense<0.000000e+00> : vector<12x48xf32>
    %104 = tpu.matmul %91, %13, %cst_58 {dimension_numbers = #tpu.dot_dimension_numbers<[1], [0], [0], [1], [0, 0, 1, 1], [], []>} : vector<12x16xf32>, vector<16x48xf32>, vector<12x48xf32> -> vector<12x48xf32>
    %105 = vector.broadcast %15 : vector<1x48xf32> to vector<12x48xf32>
    %106 = arith.addf %104, %105 : vector<12x48xf32>
    %107 = vector.extract_strided_slice %103 {offsets = [0, 0], sizes = [12, 16], strides = [1, 1]} : vector<12x48xf32> to vector<12x16xf32>
    %108 = vector.extract_strided_slice %106 {offsets = [0, 0], sizes = [12, 16], strides = [1, 1]} : vector<12x48xf32> to vector<12x16xf32>
    %109 = arith.addf %107, %108 : vector<12x16xf32>
    %110 = arith.negf %109 : vector<12x16xf32>
    %111 = math.exp %110 : vector<12x16xf32>
    %cst_59 = arith.constant 1.000000e+00 : f32
    %112 = vector.broadcast %cst_59 : f32 to vector<12x16xf32>
    %113 = arith.addf %112, %111 : vector<12x16xf32>
    %114 = arith.divf %112, %113 : vector<12x16xf32>
    %115 = vector.extract_strided_slice %103 {offsets = [0, 16], sizes = [12, 16], strides = [1, 1]} : vector<12x48xf32> to vector<12x16xf32>
    %116 = vector.extract_strided_slice %106 {offsets = [0, 16], sizes = [12, 16], strides = [1, 1]} : vector<12x48xf32> to vector<12x16xf32>
    %117 = arith.addf %115, %116 : vector<12x16xf32>
    %118 = arith.negf %117 : vector<12x16xf32>
    %119 = math.exp %118 : vector<12x16xf32>
    %cst_60 = arith.constant 1.000000e+00 : f32
    %120 = vector.broadcast %cst_60 : f32 to vector<12x16xf32>
    %121 = arith.addf %120, %119 : vector<12x16xf32>
    %122 = arith.divf %120, %121 : vector<12x16xf32>
    %123 = vector.extract_strided_slice %103 {offsets = [0, 32], sizes = [12, 16], strides = [1, 1]} : vector<12x48xf32> to vector<12x16xf32>
    %124 = vector.extract_strided_slice %106 {offsets = [0, 32], sizes = [12, 16], strides = [1, 1]} : vector<12x48xf32> to vector<12x16xf32>
    %125 = arith.mulf %114, %124 : vector<12x16xf32>
    %126 = arith.addf %123, %125 : vector<12x16xf32>
    %127 = math.tanh %126 : vector<12x16xf32>
    %cst_61 = arith.constant 1.000000e+00 : f32
    %128 = vector.broadcast %cst_61 : f32 to vector<12x16xf32>
    %129 = arith.subf %128, %122 : vector<12x16xf32>
    %130 = arith.mulf %129, %127 : vector<12x16xf32>
    %131 = arith.mulf %122, %91 : vector<12x16xf32>
    %132 = arith.addf %130, %131 : vector<12x16xf32>
    %cst_62 = arith.constant dense<0.000000e+00> : vector<24x16xf32>
    %133 = tpu.matmul %2, %132, %cst_62 {dimension_numbers = #tpu.dot_dimension_numbers<[1], [0], [0], [1], [0, 0, 1, 1], [], []>} : vector<24x12xf32>, vector<12x16xf32>, vector<24x16xf32> -> vector<24x16xf32>
    %cst_63 = arith.constant dense<0.000000e+00> : vector<24x256xf32>
    %134 = tpu.matmul %133, %31, %cst_63 {dimension_numbers = #tpu.dot_dimension_numbers<[1], [0], [0], [1], [0, 0, 1, 1], [], []>} : vector<24x16xf32>, vector<16x256xf32>, vector<24x256xf32> -> vector<24x256xf32>
    %135 = arith.mulf %134, %50 : vector<24x256xf32>
    %cst_64 = arith.constant dense<0.000000e+00> : vector<24x16xf32>
    %136 = tpu.matmul %135, %37, %cst_64 {dimension_numbers = #tpu.dot_dimension_numbers<[1], [0], [0], [1], [0, 0, 1, 1], [], []>} : vector<24x256xf32>, vector<256x16xf32>, vector<24x16xf32> -> vector<24x16xf32>
    %cst_65 = arith.constant dense<0.000000e+00> : vector<12x16xf32>
    %137 = tpu.matmul %3, %136, %cst_65 {dimension_numbers = #tpu.dot_dimension_numbers<[1], [0], [0], [1], [0, 0, 1, 1], [], []>} : vector<12x24xf32>, vector<24x16xf32>, vector<12x16xf32> -> vector<12x16xf32>
    %138 = vector.broadcast %11 : vector<1x16xf32> to vector<12x16xf32>
    %139 = arith.addf %137, %138 : vector<12x16xf32>
    %cst_66 = arith.constant 0.000000e+00 : f32
    %140 = vector.broadcast %cst_66 : f32 to vector<12x16xf32>
    %141 = arith.maximumf %139, %140 : vector<12x16xf32>
    %cst_67 = arith.constant dense<0.000000e+00> : vector<12x48xf32>
    %142 = tpu.matmul %141, %12, %cst_67 {dimension_numbers = #tpu.dot_dimension_numbers<[1], [0], [0], [1], [0, 0, 1, 1], [], []>} : vector<12x16xf32>, vector<16x48xf32>, vector<12x48xf32> -> vector<12x48xf32>
    %143 = vector.broadcast %14 : vector<1x48xf32> to vector<12x48xf32>
    %144 = arith.addf %142, %143 : vector<12x48xf32>
    %cst_68 = arith.constant dense<0.000000e+00> : vector<12x48xf32>
    %145 = tpu.matmul %132, %13, %cst_68 {dimension_numbers = #tpu.dot_dimension_numbers<[1], [0], [0], [1], [0, 0, 1, 1], [], []>} : vector<12x16xf32>, vector<16x48xf32>, vector<12x48xf32> -> vector<12x48xf32>
    %146 = vector.broadcast %15 : vector<1x48xf32> to vector<12x48xf32>
    %147 = arith.addf %145, %146 : vector<12x48xf32>
    %148 = vector.extract_strided_slice %144 {offsets = [0, 0], sizes = [12, 16], strides = [1, 1]} : vector<12x48xf32> to vector<12x16xf32>
    %149 = vector.extract_strided_slice %147 {offsets = [0, 0], sizes = [12, 16], strides = [1, 1]} : vector<12x48xf32> to vector<12x16xf32>
    %150 = arith.addf %148, %149 : vector<12x16xf32>
    %151 = arith.negf %150 : vector<12x16xf32>
    %152 = math.exp %151 : vector<12x16xf32>
    %cst_69 = arith.constant 1.000000e+00 : f32
    %153 = vector.broadcast %cst_69 : f32 to vector<12x16xf32>
    %154 = arith.addf %153, %152 : vector<12x16xf32>
    %155 = arith.divf %153, %154 : vector<12x16xf32>
    %156 = vector.extract_strided_slice %144 {offsets = [0, 16], sizes = [12, 16], strides = [1, 1]} : vector<12x48xf32> to vector<12x16xf32>
    %157 = vector.extract_strided_slice %147 {offsets = [0, 16], sizes = [12, 16], strides = [1, 1]} : vector<12x48xf32> to vector<12x16xf32>
    %158 = arith.addf %156, %157 : vector<12x16xf32>
    %159 = arith.negf %158 : vector<12x16xf32>
    %160 = math.exp %159 : vector<12x16xf32>
    %cst_70 = arith.constant 1.000000e+00 : f32
    %161 = vector.broadcast %cst_70 : f32 to vector<12x16xf32>
    %162 = arith.addf %161, %160 : vector<12x16xf32>
    %163 = arith.divf %161, %162 : vector<12x16xf32>
    %164 = vector.extract_strided_slice %144 {offsets = [0, 32], sizes = [12, 16], strides = [1, 1]} : vector<12x48xf32> to vector<12x16xf32>
    %165 = vector.extract_strided_slice %147 {offsets = [0, 32], sizes = [12, 16], strides = [1, 1]} : vector<12x48xf32> to vector<12x16xf32>
    %166 = arith.mulf %155, %165 : vector<12x16xf32>
    %167 = arith.addf %164, %166 : vector<12x16xf32>
    %168 = math.tanh %167 : vector<12x16xf32>
    %cst_71 = arith.constant 1.000000e+00 : f32
    %169 = vector.broadcast %cst_71 : f32 to vector<12x16xf32>
    %170 = arith.subf %169, %163 : vector<12x16xf32>
    %171 = arith.mulf %170, %168 : vector<12x16xf32>
    %172 = arith.mulf %163, %132 : vector<12x16xf32>
    %173 = arith.addf %171, %172 : vector<12x16xf32>
    %174 = tpu.transpose %173, [1, 0] : vector<12x16xf32> -> vector<16x12xf32>
    %cst_72 = arith.constant 0.000000e+00 : f32
    %175 = vector.broadcast %cst_72 : f32 to vector<2x12xf32>
    %176 = arith.cmpf ogt, %4, %175 : vector<2x12xf32>
    %cst_73 = arith.constant -1.000000e+30 : f32
    %177 = vector.broadcast %cst_73 : f32 to vector<2x12xf32>
    %cst_74 = arith.constant 0.000000e+00 : f32
    %178 = vector.broadcast %cst_74 : f32 to vector<2x16xf32>
    %cst_75 = arith.constant 0.000000e+00 : f32
    %179 = vector.broadcast %cst_75 : f32 to vector<2x16xf32>
    %cst_76 = arith.constant 0.000000e+00 : f32
    %180 = vector.broadcast %cst_76 : f32 to vector<2x16xf32>
    %cst_77 = arith.constant dense<0.000000e+00> : vector<2x64xf32>
    %181 = tpu.matmul %179, %16, %cst_77 {dimension_numbers = #tpu.dot_dimension_numbers<[1], [0], [0], [1], [0, 0, 1, 1], [], []>} : vector<2x16xf32>, vector<16x64xf32>, vector<2x64xf32> -> vector<2x64xf32>
    %cst_78 = arith.constant dense<0.000000e+00> : vector<2x64xf32>
    %182 = tpu.matmul %180, %17, %cst_78 {dimension_numbers = #tpu.dot_dimension_numbers<[1], [0], [0], [1], [0, 0, 1, 1], [], []>} : vector<2x16xf32>, vector<16x64xf32>, vector<2x64xf32> -> vector<2x64xf32>
    %183 = arith.addf %181, %182 : vector<2x64xf32>
    %184 = vector.broadcast %18 : vector<1x64xf32> to vector<2x64xf32>
    %185 = arith.addf %183, %184 : vector<2x64xf32>
    %186 = vector.extract_strided_slice %185 {offsets = [0, 0], sizes = [2, 16], strides = [1, 1]} : vector<2x64xf32> to vector<2x16xf32>
    %187 = arith.negf %186 : vector<2x16xf32>
    %188 = math.exp %187 : vector<2x16xf32>
    %cst_79 = arith.constant 1.000000e+00 : f32
    %189 = vector.broadcast %cst_79 : f32 to vector<2x16xf32>
    %190 = arith.addf %189, %188 : vector<2x16xf32>
    %191 = arith.divf %189, %190 : vector<2x16xf32>
    %192 = vector.extract_strided_slice %185 {offsets = [0, 16], sizes = [2, 16], strides = [1, 1]} : vector<2x64xf32> to vector<2x16xf32>
    %193 = arith.negf %192 : vector<2x16xf32>
    %194 = math.exp %193 : vector<2x16xf32>
    %cst_80 = arith.constant 1.000000e+00 : f32
    %195 = vector.broadcast %cst_80 : f32 to vector<2x16xf32>
    %196 = arith.addf %195, %194 : vector<2x16xf32>
    %197 = arith.divf %195, %196 : vector<2x16xf32>
    %198 = vector.extract_strided_slice %185 {offsets = [0, 32], sizes = [2, 16], strides = [1, 1]} : vector<2x64xf32> to vector<2x16xf32>
    %199 = math.tanh %198 : vector<2x16xf32>
    %200 = vector.extract_strided_slice %185 {offsets = [0, 48], sizes = [2, 16], strides = [1, 1]} : vector<2x64xf32> to vector<2x16xf32>
    %201 = arith.negf %200 : vector<2x16xf32>
    %202 = math.exp %201 : vector<2x16xf32>
    %cst_81 = arith.constant 1.000000e+00 : f32
    %203 = vector.broadcast %cst_81 : f32 to vector<2x16xf32>
    %204 = arith.addf %203, %202 : vector<2x16xf32>
    %205 = arith.divf %203, %204 : vector<2x16xf32>
    %206 = arith.mulf %197, %178 : vector<2x16xf32>
    %207 = arith.mulf %191, %199 : vector<2x16xf32>
    %208 = arith.addf %206, %207 : vector<2x16xf32>
    %209 = math.tanh %208 : vector<2x16xf32>
    %210 = arith.mulf %205, %209 : vector<2x16xf32>
    %cst_82 = arith.constant dense<0.000000e+00> : vector<2x12xf32>
    %211 = tpu.matmul %210, %174, %cst_82 {dimension_numbers = #tpu.dot_dimension_numbers<[1], [0], [0], [1], [0, 0, 1, 1], [], []>} : vector<2x16xf32>, vector<16x12xf32>, vector<2x12xf32> -> vector<2x12xf32>
    %212 = arith.select %176, %211, %177 : vector<2x12xi1>, vector<2x12xf32>
    %cst_83 = arith.constant dense<0xFF800000> : vector<2xf32>
    %213 = vector.multi_reduction <maximumf>, %212, %cst_83 [1] : vector<2x12xf32> to vector<2xf32>
    %214 = vector.shape_cast %213 : vector<2xf32> to vector<2x1xf32>
    %215 = vector.broadcast %214 : vector<2x1xf32> to vector<2x12xf32>
    %216 = arith.subf %212, %215 : vector<2x12xf32>
    %217 = math.exp %216 : vector<2x12xf32>
    %218 = arith.mulf %217, %4 : vector<2x12xf32>
    %cst_84 = arith.constant dense<0.000000e+00> : vector<2xf32>
    %219 = vector.multi_reduction <add>, %218, %cst_84 [1] : vector<2x12xf32> to vector<2xf32>
    %220 = vector.shape_cast %219 : vector<2xf32> to vector<2x1xf32>
    %cst_85 = arith.constant 9.99999968E-21 : f32
    %221 = vector.broadcast %cst_85 : f32 to vector<2x1xf32>
    %222 = arith.maximumf %220, %221 : vector<2x1xf32>
    %223 = vector.broadcast %222 : vector<2x1xf32> to vector<2x12xf32>
    %224 = arith.divf %218, %223 : vector<2x12xf32>
    %cst_86 = arith.constant dense<0.000000e+00> : vector<2x16xf32>
    %225 = tpu.matmul %224, %173, %cst_86 {dimension_numbers = #tpu.dot_dimension_numbers<[1], [0], [0], [1], [0, 0, 1, 1], [], []>} : vector<2x12xf32>, vector<12x16xf32>, vector<2x16xf32> -> vector<2x16xf32>
    %cst_87 = arith.constant dense<0.000000e+00> : vector<2x64xf32>
    %226 = tpu.matmul %210, %16, %cst_87 {dimension_numbers = #tpu.dot_dimension_numbers<[1], [0], [0], [1], [0, 0, 1, 1], [], []>} : vector<2x16xf32>, vector<16x64xf32>, vector<2x64xf32> -> vector<2x64xf32>
    %cst_88 = arith.constant dense<0.000000e+00> : vector<2x64xf32>
    %227 = tpu.matmul %225, %17, %cst_88 {dimension_numbers = #tpu.dot_dimension_numbers<[1], [0], [0], [1], [0, 0, 1, 1], [], []>} : vector<2x16xf32>, vector<16x64xf32>, vector<2x64xf32> -> vector<2x64xf32>
    %228 = arith.addf %226, %227 : vector<2x64xf32>
    %229 = vector.broadcast %18 : vector<1x64xf32> to vector<2x64xf32>
    %230 = arith.addf %228, %229 : vector<2x64xf32>
    %231 = vector.extract_strided_slice %230 {offsets = [0, 0], sizes = [2, 16], strides = [1, 1]} : vector<2x64xf32> to vector<2x16xf32>
    %232 = arith.negf %231 : vector<2x16xf32>
    %233 = math.exp %232 : vector<2x16xf32>
    %cst_89 = arith.constant 1.000000e+00 : f32
    %234 = vector.broadcast %cst_89 : f32 to vector<2x16xf32>
    %235 = arith.addf %234, %233 : vector<2x16xf32>
    %236 = arith.divf %234, %235 : vector<2x16xf32>
    %237 = vector.extract_strided_slice %230 {offsets = [0, 16], sizes = [2, 16], strides = [1, 1]} : vector<2x64xf32> to vector<2x16xf32>
    %238 = arith.negf %237 : vector<2x16xf32>
    %239 = math.exp %238 : vector<2x16xf32>
    %cst_90 = arith.constant 1.000000e+00 : f32
    %240 = vector.broadcast %cst_90 : f32 to vector<2x16xf32>
    %241 = arith.addf %240, %239 : vector<2x16xf32>
    %242 = arith.divf %240, %241 : vector<2x16xf32>
    %243 = vector.extract_strided_slice %230 {offsets = [0, 32], sizes = [2, 16], strides = [1, 1]} : vector<2x64xf32> to vector<2x16xf32>
    %244 = math.tanh %243 : vector<2x16xf32>
    %245 = vector.extract_strided_slice %230 {offsets = [0, 48], sizes = [2, 16], strides = [1, 1]} : vector<2x64xf32> to vector<2x16xf32>
    %246 = arith.negf %245 : vector<2x16xf32>
    %247 = math.exp %246 : vector<2x16xf32>
    %cst_91 = arith.constant 1.000000e+00 : f32
    %248 = vector.broadcast %cst_91 : f32 to vector<2x16xf32>
    %249 = arith.addf %248, %247 : vector<2x16xf32>
    %250 = arith.divf %248, %249 : vector<2x16xf32>
    %251 = arith.mulf %242, %208 : vector<2x16xf32>
    %252 = arith.mulf %236, %244 : vector<2x16xf32>
    %253 = arith.addf %251, %252 : vector<2x16xf32>
    %254 = math.tanh %253 : vector<2x16xf32>
    %255 = arith.mulf %250, %254 : vector<2x16xf32>
    %cst_92 = arith.constant dense<0.000000e+00> : vector<2x12xf32>
    %256 = tpu.matmul %255, %174, %cst_92 {dimension_numbers = #tpu.dot_dimension_numbers<[1], [0], [0], [1], [0, 0, 1, 1], [], []>} : vector<2x16xf32>, vector<16x12xf32>, vector<2x12xf32> -> vector<2x12xf32>
    %257 = arith.select %176, %256, %177 : vector<2x12xi1>, vector<2x12xf32>
    %cst_93 = arith.constant dense<0xFF800000> : vector<2xf32>
    %258 = vector.multi_reduction <maximumf>, %257, %cst_93 [1] : vector<2x12xf32> to vector<2xf32>
    %259 = vector.shape_cast %258 : vector<2xf32> to vector<2x1xf32>
    %260 = vector.broadcast %259 : vector<2x1xf32> to vector<2x12xf32>
    %261 = arith.subf %257, %260 : vector<2x12xf32>
    %262 = math.exp %261 : vector<2x12xf32>
    %263 = arith.mulf %262, %4 : vector<2x12xf32>
    %cst_94 = arith.constant dense<0.000000e+00> : vector<2xf32>
    %264 = vector.multi_reduction <add>, %263, %cst_94 [1] : vector<2x12xf32> to vector<2xf32>
    %265 = vector.shape_cast %264 : vector<2xf32> to vector<2x1xf32>
    %cst_95 = arith.constant 9.99999968E-21 : f32
    %266 = vector.broadcast %cst_95 : f32 to vector<2x1xf32>
    %267 = arith.maximumf %265, %266 : vector<2x1xf32>
    %268 = vector.broadcast %267 : vector<2x1xf32> to vector<2x12xf32>
    %269 = arith.divf %263, %268 : vector<2x12xf32>
    %cst_96 = arith.constant dense<0.000000e+00> : vector<2x16xf32>
    %270 = tpu.matmul %269, %173, %cst_96 {dimension_numbers = #tpu.dot_dimension_numbers<[1], [0], [0], [1], [0, 0, 1, 1], [], []>} : vector<2x12xf32>, vector<12x16xf32>, vector<2x16xf32> -> vector<2x16xf32>
    %cst_97 = arith.constant dense<0.000000e+00> : vector<2x64xf32>
    %271 = tpu.matmul %255, %16, %cst_97 {dimension_numbers = #tpu.dot_dimension_numbers<[1], [0], [0], [1], [0, 0, 1, 1], [], []>} : vector<2x16xf32>, vector<16x64xf32>, vector<2x64xf32> -> vector<2x64xf32>
    %cst_98 = arith.constant dense<0.000000e+00> : vector<2x64xf32>
    %272 = tpu.matmul %270, %17, %cst_98 {dimension_numbers = #tpu.dot_dimension_numbers<[1], [0], [0], [1], [0, 0, 1, 1], [], []>} : vector<2x16xf32>, vector<16x64xf32>, vector<2x64xf32> -> vector<2x64xf32>
    %273 = arith.addf %271, %272 : vector<2x64xf32>
    %274 = vector.broadcast %18 : vector<1x64xf32> to vector<2x64xf32>
    %275 = arith.addf %273, %274 : vector<2x64xf32>
    %276 = vector.extract_strided_slice %275 {offsets = [0, 0], sizes = [2, 16], strides = [1, 1]} : vector<2x64xf32> to vector<2x16xf32>
    %277 = arith.negf %276 : vector<2x16xf32>
    %278 = math.exp %277 : vector<2x16xf32>
    %cst_99 = arith.constant 1.000000e+00 : f32
    %279 = vector.broadcast %cst_99 : f32 to vector<2x16xf32>
    %280 = arith.addf %279, %278 : vector<2x16xf32>
    %281 = arith.divf %279, %280 : vector<2x16xf32>
    %282 = vector.extract_strided_slice %275 {offsets = [0, 16], sizes = [2, 16], strides = [1, 1]} : vector<2x64xf32> to vector<2x16xf32>
    %283 = arith.negf %282 : vector<2x16xf32>
    %284 = math.exp %283 : vector<2x16xf32>
    %cst_100 = arith.constant 1.000000e+00 : f32
    %285 = vector.broadcast %cst_100 : f32 to vector<2x16xf32>
    %286 = arith.addf %285, %284 : vector<2x16xf32>
    %287 = arith.divf %285, %286 : vector<2x16xf32>
    %288 = vector.extract_strided_slice %275 {offsets = [0, 32], sizes = [2, 16], strides = [1, 1]} : vector<2x64xf32> to vector<2x16xf32>
    %289 = math.tanh %288 : vector<2x16xf32>
    %290 = vector.extract_strided_slice %275 {offsets = [0, 48], sizes = [2, 16], strides = [1, 1]} : vector<2x64xf32> to vector<2x16xf32>
    %291 = arith.negf %290 : vector<2x16xf32>
    %292 = math.exp %291 : vector<2x16xf32>
    %cst_101 = arith.constant 1.000000e+00 : f32
    %293 = vector.broadcast %cst_101 : f32 to vector<2x16xf32>
    %294 = arith.addf %293, %292 : vector<2x16xf32>
    %295 = arith.divf %293, %294 : vector<2x16xf32>
    %296 = arith.mulf %287, %253 : vector<2x16xf32>
    %297 = arith.mulf %281, %289 : vector<2x16xf32>
    %298 = arith.addf %296, %297 : vector<2x16xf32>
    %299 = math.tanh %298 : vector<2x16xf32>
    %300 = arith.mulf %295, %299 : vector<2x16xf32>
    %cst_102 = arith.constant dense<0.000000e+00> : vector<2x12xf32>
    %301 = tpu.matmul %300, %174, %cst_102 {dimension_numbers = #tpu.dot_dimension_numbers<[1], [0], [0], [1], [0, 0, 1, 1], [], []>} : vector<2x16xf32>, vector<16x12xf32>, vector<2x12xf32> -> vector<2x12xf32>
    %302 = arith.select %176, %301, %177 : vector<2x12xi1>, vector<2x12xf32>
    %cst_103 = arith.constant dense<0xFF800000> : vector<2xf32>
    %303 = vector.multi_reduction <maximumf>, %302, %cst_103 [1] : vector<2x12xf32> to vector<2xf32>
    %304 = vector.shape_cast %303 : vector<2xf32> to vector<2x1xf32>
    %305 = vector.broadcast %304 : vector<2x1xf32> to vector<2x12xf32>
    %306 = arith.subf %302, %305 : vector<2x12xf32>
    %307 = math.exp %306 : vector<2x12xf32>
    %308 = arith.mulf %307, %4 : vector<2x12xf32>
    %cst_104 = arith.constant dense<0.000000e+00> : vector<2xf32>
    %309 = vector.multi_reduction <add>, %308, %cst_104 [1] : vector<2x12xf32> to vector<2xf32>
    %310 = vector.shape_cast %309 : vector<2xf32> to vector<2x1xf32>
    %cst_105 = arith.constant 9.99999968E-21 : f32
    %311 = vector.broadcast %cst_105 : f32 to vector<2x1xf32>
    %312 = arith.maximumf %310, %311 : vector<2x1xf32>
    %313 = vector.broadcast %312 : vector<2x1xf32> to vector<2x12xf32>
    %314 = arith.divf %308, %313 : vector<2x12xf32>
    %cst_106 = arith.constant dense<0.000000e+00> : vector<2x16xf32>
    %315 = tpu.matmul %314, %173, %cst_106 {dimension_numbers = #tpu.dot_dimension_numbers<[1], [0], [0], [1], [0, 0, 1, 1], [], []>} : vector<2x12xf32>, vector<12x16xf32>, vector<2x16xf32> -> vector<2x16xf32>
    %316 = tpu.concatenate %300, %315 in 1 : vector<2x16xf32>, vector<2x16xf32> -> vector<2x32xf32>
    %cst_107 = arith.constant 0.000000e+00 : f32
    %317 = vector.broadcast %cst_107 : f32 to vector<2x96xf32>
    %318 = tpu.concatenate %316, %317 in 1 : vector<2x32xf32>, vector<2x96xf32> -> vector<2x128xf32>
    %c0_108 = arith.constant 0 : index
    %c0_109 = arith.constant 0 : index
    %319 = vector.load %arg19[%c0_108, %c0_109] : memref<2x128xf32, #tpu.memory_space<vmem>>, vector<2x128xf32>
    tpu.vector_store %arg19[%c0_108, %c0_109], %318 {strides = array<i32>} : memref<2x128xf32, #tpu.memory_space<vmem>>, vector<2x128xf32>,
    %cst_110 = arith.constant 0.000000e+00 : f32
    %320 = vector.broadcast %cst_110 : f32 to vector<12x112xf32>
    %321 = tpu.concatenate %173, %320 in 1 : vector<12x16xf32>, vector<12x112xf32> -> vector<12x128xf32>
    %c0_111 = arith.constant 0 : index
    %c0_112 = arith.constant 0 : index
    %322 = vector.load %arg20[%c0_111, %c0_112] : memref<12x128xf32, #tpu.memory_space<vmem>>, vector<12x128xf32>
    tpu.vector_store %arg20[%c0_111, %c0_112], %321 {strides = array<i32>} : memref<12x128xf32, #tpu.memory_space<vmem>>, vector<12x128xf32>,
    return
  }
}

</mosaic_0001>

<llo_original>
// kernel: sup_encoder_forward.1
$region0: #{sup_encoder_forward.1}
  #allocation0 [shape = 'u32[]', space=smem, size = 0x4, offset = 0x4, fixed_abs, tag = 'smem constant byte address 0x4 - core index']
  #allocation1 [shape = 'u32[72,128]{1,0:T(1,128)}', space=vmem, size = 0x9000, scoped, tag = 'internal scratch']
  %s0 = inlined_call_operand.vmem [shape: f32[12,8], index: 0, kind: input, shape index: {}]
  %s1 = inlined_call_operand.vmem [shape: f32[24,5], index: 1, kind: input, shape index: {}]
  %s2 = inlined_call_operand.vmem [shape: f32[24,12], index: 2, kind: input, shape index: {}]
  %s3 = inlined_call_operand.vmem [shape: f32[12,24], index: 3, kind: input, shape index: {}]
  %s4 = inlined_call_operand.vmem [shape: f32[2,12], index: 4, kind: input, shape index: {}]
  %s5 = inlined_call_operand.vmem [shape: f32[8,16], index: 5, kind: input, shape index: {}]
  %s6 = inlined_call_operand.vmem [shape: f32[1,16], index: 6, kind: input, shape index: {}]
  %s7 = inlined_call_operand.vmem [shape: f32[5,128], index: 7, kind: input, shape index: {}]
  %s8 = inlined_call_operand.vmem [shape: f32[1,128], index: 8, kind: input, shape index: {}]
  %s9 = inlined_call_operand.hbm [shape: f32[128,256], index: 9, kind: input, shape index: {}]
  %s10 = inlined_call_operand.vmem [shape: f32[1,256], index: 10, kind: input, shape index: {}]
  %s11 = inlined_call_operand.vmem [shape: f32[1,16], index: 11, kind: input, shape index: {}]
  %s12 = inlined_call_operand.vmem [shape: f32[16,48], index: 12, kind: input, shape index: {}]
  %s13 = inlined_call_operand.vmem [shape: f32[16,48], index: 13, kind: input, shape index: {}]
  %s14 = inlined_call_operand.vmem [shape: f32[1,48], index: 14, kind: input, shape index: {}]
  %s15 = inlined_call_operand.vmem [shape: f32[1,48], index: 15, kind: input, shape index: {}]
  %s16 = inlined_call_operand.vmem [shape: f32[16,64], index: 16, kind: input, shape index: {}]
  %s17 = inlined_call_operand.vmem [shape: f32[16,64], index: 17, kind: input, shape index: {}]
  %s18 = inlined_call_operand.vmem [shape: f32[1,64], index: 18, kind: input, shape index: {}]
  %s19 = inlined_call_operand.hbm [shape: f32[2,128], index: 19, kind: output, shape index: {0}]
  %s20 = inlined_call_operand.hbm [shape: f32[12,128], index: 20, kind: output, shape index: {1}]
  %21 = xla_tuple %s19, %s20
  %s22 = sld [smem:[#allocation0]]
  $region98: #{sup_encoder_forward.1} parent=0
    _
  %s24 = ssub.s32 1, %s22
  %s25 = scalar_select 0, %s24, %s22
  $region1: #{sup_encoder_forward.1} parent=0
    #allocation2 [shape = 'u8[131072]{0}', space=vmem, size = 0x20000, scoped, tag = 'input window, operand 9, single buffered']
    #allocation3 [shape = 's32[1]{0}', space=sflag, size = 0x4, scoped, tag = 'scoped memory for sup_encoder_forward.1']
    #allocation4 [shape = 's32[1]{0}', space=sflag, size = 0x4, scoped, tag = 'scoped memory for sup_encoder_forward.1']
    #allocation5 [shape = 'u8[1024]{0}', space=vmem, size = 0x400, scoped, tag = 'output window, operand 0, single buffered']
    #allocation6 [shape = 'u8[8192]{0}', space=vmem, size = 0x2000, scoped, tag = 'output window, operand 1, single buffered']
    #allocation7 [shape = 's32[1]{0}', space=sflag, size = 0x4, scoped, tag = 'scoped memory for sup_encoder_forward.1']
    %26 = vsyncpa [#allocation3], 0
    %27 = vsyncpa [#allocation4], 0
    %28 = vsyncpa [#allocation7], 0
    // Predicated region
    $region2: #{sup_encoder_forward.1} parent=1 // pred_check
      _
    $region3: #{sup_encoder_forward.1} parent=1 // pred_check_branch
      %30 = sbr.rel (0) target = $region5
    $region4: #{sup_encoder_forward.1} parent=1 // pred_region
      _
    $region5: #{sup_encoder_forward.1} parent=1 // pred_fallthru
      _
    // Predicated region
    $region6: #{sup_encoder_forward.1} parent=1 // pred_check
      _
    $region7: #{sup_encoder_forward.1} parent=1 // pred_check_branch
      %32 = sbr.rel (0) target = $region9
    $region8: #{sup_encoder_forward.1} parent=1 // pred_region
      _
    $region9: #{sup_encoder_forward.1} parent=1 // pred_fallthru
      _
    // Predicated region
    $region10: #{sup_encoder_forward.1} parent=1 // pred_check
      _
    $region11: #{sup_encoder_forward.1} parent=1 // pred_check_branch
      %34 = sbr.rel (0) target = $region13
    $region12: #{sup_encoder_forward.1} parent=1 // pred_region
      _
    $region13: #{sup_encoder_forward.1} parent=1 // pred_fallthru
      _
    // Predicated region
    $region14: #{sup_encoder_forward.1} parent=1 // pred_check
      _
    $region15: #{sup_encoder_forward.1} parent=1 // pred_check_branch
      %36 = sbr.rel (0) target = $region17
    $region16: #{sup_encoder_forward.1} parent=1 // pred_region
      _
    $region17: #{sup_encoder_forward.1} parent=1 // pred_fallthru
      _
    // Predicated region
    $region18: #{sup_encoder_forward.1} parent=1 // pred_check
      _
    $region19: #{sup_encoder_forward.1} parent=1 // pred_check_branch
      %38 = sbr.rel (0) target = $region21
    $region20: #{sup_encoder_forward.1} parent=1 // pred_region
      _
    $region21: #{sup_encoder_forward.1} parent=1 // pred_fallthru
      _
    // Predicated region
    $region22: #{sup_encoder_forward.1} parent=1 // pred_check
      _
    $region23: #{sup_encoder_forward.1} parent=1 // pred_check_branch
      %40 = sbr.rel (0) target = $region25
    $region24: #{sup_encoder_forward.1} parent=1 // pred_region
      _
    $region25: #{sup_encoder_forward.1} parent=1 // pred_fallthru
      _
    // Predicated region
    $region26: #{sup_encoder_forward.1} parent=1 // pred_check
      _
    $region27: #{sup_encoder_forward.1} parent=1 // pred_check_branch
      %42 = sbr.rel (0) target = $region29
    $region28: #{sup_encoder_forward.1} parent=1 // pred_region
      _
    $region29: #{sup_encoder_forward.1} parent=1 // pred_fallthru
      _
    // Predicated region
    $region30: #{sup_encoder_forward.1} parent=1 // pred_check
      _
    $region31: #{sup_encoder_forward.1} parent=1 // pred_check_branch
      %44 = sbr.rel (0) target = $region33
    $region32: #{sup_encoder_forward.1} parent=1 // pred_region
      _
    $region33: #{sup_encoder_forward.1} parent=1 // pred_fallthru
      _
    // Predicated region
    $region34: #{sup_encoder_forward.1} parent=1 // pred_check
      _
    $region35: #{sup_encoder_forward.1} parent=1 // pred_check_branch
      %46 = sbr.rel (0) target = $region37
    $region36: #{sup_encoder_forward.1} parent=1 // pred_region
      _
    $region37: #{sup_encoder_forward.1} parent=1 // pred_fallthru
      _
    // Predicated region
    $region38: #{sup_encoder_forward.1} parent=1 // pred_check
      _
    $region39: #{sup_encoder_forward.1} parent=1 // pred_check_branch
      %48 = sbr.rel (0) target = $region41
    $region40: #{sup_encoder_forward.1} parent=1 // pred_region
      %50 = vsyncadd [#allocation3], 0
      %s51 = sshll.u32 %s9, 4
      %s52 = int_to_ptr.hbm [resolvable:$true] %s51
      %s53 = sshll.u32 [#allocation2], 4
      %s54 = int_to_ptr.vmem [resolvable:$true] %s53
      %59 = dma.hbm_to_vmem [thread:$0]  %s52, 4096, %s54, [#allocation3], 256, 256, 16
    $region41: #{sup_encoder_forward.1} parent=1 // pred_fallthru
      _
    // Predicated region
    $region42: #{sup_encoder_forward.1} parent=1 // pred_check
      _
    $region43: #{sup_encoder_forward.1} parent=1 // pred_check_branch
      %61 = sbr.rel (0) target = $region45
    $region44: #{sup_encoder_forward.1} parent=1 // pred_region
      _
    $region45: #{sup_encoder_forward.1} parent=1 // pred_fallthru
      _
    // Predicated region
    $region46: #{sup_encoder_forward.1} parent=1 // pred_check
      _
    $region47: #{sup_encoder_forward.1} parent=1 // pred_check_branch
      %63 = sbr.rel (0) target = $region49
    $region48: #{sup_encoder_forward.1} parent=1 // pred_region
      _
    $region49: #{sup_encoder_forward.1} parent=1 // pred_fallthru
      _
    // Predicated region
    $region50: #{sup_encoder_forward.1} parent=1 // pred_check
      _
    $region51: #{sup_encoder_forward.1} parent=1 // pred_check_branch
      %65 = sbr.rel (0) target = $region53
    $region52: #{sup_encoder_forward.1} parent=1 // pred_region
      _
    $region53: #{sup_encoder_forward.1} parent=1 // pred_fallthru
      _
    // Predicated region
    $region54: #{sup_encoder_forward.1} parent=1 // pred_check
      _
    $region55: #{sup_encoder_forward.1} parent=1 // pred_check_branch
      %67 = sbr.rel (0) target = $region57
    $region56: #{sup_encoder_forward.1} parent=1 // pred_region
      _
    $region57: #{sup_encoder_forward.1} parent=1 // pred_fallthru
      _
    // Predicated region
    $region58: #{sup_encoder_forward.1} parent=1 // pred_check
      _
    $region59: #{sup_encoder_forward.1} parent=1 // pred_check_branch
      %69 = sbr.rel (0) target = $region61
    $region60: #{sup_encoder_forward.1} parent=1 // pred_region
      _
    $region61: #{sup_encoder_forward.1} parent=1 // pred_fallthru
      _
    // Predicated region
    $region62: #{sup_encoder_forward.1} parent=1 // pred_check
      _
    $region63: #{sup_encoder_forward.1} parent=1 // pred_check_branch
      %71 = sbr.rel (0) target = $region65
    $region64: #{sup_encoder_forward.1} parent=1 // pred_region
      _
    $region65: #{sup_encoder_forward.1} parent=1 // pred_fallthru
      _
    // Predicated region
    $region66: #{sup_encoder_forward.1} parent=1 // pred_check
      _
    $region67: #{sup_encoder_forward.1} parent=1 // pred_check_branch
      %73 = sbr.rel (0) target = $region69
    $region68: #{sup_encoder_forward.1} parent=1 // pred_region
      _
    $region69: #{sup_encoder_forward.1} parent=1 // pred_fallthru
      _
    // Predicated region
    $region70: #{sup_encoder_forward.1} parent=1 // pred_check
      _
    $region71: #{sup_encoder_forward.1} parent=1 // pred_check_branch
      %75 = sbr.rel (0) target = $region73
    $region72: #{sup_encoder_forward.1} parent=1 // pred_region
      _
    $region73: #{sup_encoder_forward.1} parent=1 // pred_fallthru
      _
    // Predicated region
    $region74: #{sup_encoder_forward.1} parent=1 // pred_check
      _
    $region75: #{sup_encoder_forward.1} parent=1 // pred_check_branch
      %77 = sbr.rel (0) target = $region77
    $region76: #{sup_encoder_forward.1} parent=1 // pred_region
      _
    $region77: #{sup_encoder_forward.1} parent=1 // pred_fallthru
      _
    // Predicated region
    $region78: #{sup_encoder_forward.1} parent=1 // pred_check
      _
    $region79: #{sup_encoder_forward.1} parent=1 // pred_check_branch
      %79 = sbr.rel (0) target = $region81
    $region80: #{sup_encoder_forward.1} parent=1 // pred_region
      %81 = dma.done [#allocation3], 4096
    $region81: #{sup_encoder_forward.1} parent=1 // pred_fallthru
      _
    %v82 = vld [vmem:[%s0] sm:$0xff]
    %v83 = vld [vmem:[%s0 + $0x8] sm:$0xf]
    %v84 = vld [vmem:[%s1] sm:$0xff]
    %v85 = vld [vmem:[%s1 + $0x8] sm:$0xff]
    %v86 = vld [vmem:[%s1 + $0x10] sm:$0xff]
    %v87 = vld [vmem:[%s2] sm:$0xff]
    %v88 = vld [vmem:[%s2 + $0x8] sm:$0xff]
    %v89 = vld [vmem:[%s2 + $0x10] sm:$0xff]
    %v90 = vld [vmem:[%s3] sm:$0xff]
    %v91 = vld [vmem:[%s3 + $0x8] sm:$0xf]
    %v92 = vld [vmem:[%s4] sm:$0x3]
    %v93 = vld [vmem:[%s5] sm:$0xff]
    %v94 = vld [vmem:[%s6] sm:$0x1]
    %v95 = vld [vmem:[%s7] sm:$0x1f]
    %v96 = vld [vmem:[%s8] sm:$0x1]
    %v97 = vld [vmem:[#allocation2] sm:$0xff]
    %v98 = vld [vmem:[#allocation2 + $0x8] sm:$0xff]
    %v99 = vld [vmem:[#allocation2 + $0x10] sm:$0xff]
    %v100 = vld [vmem:[#allocation2 + $0x18] sm:$0xff]
    %v101 = vld [vmem:[#allocation2 + $0x20] sm:$0xff]
    %v102 = vld [vmem:[#allocation2 + $0x28] sm:$0xff]
    %v103 = vld [vmem:[#allocation2 + $0x30] sm:$0xff]
    %v104 = vld [vmem:[#allocation2 + $0x38] sm:$0xff]
    %v105 = vld [vmem:[#allocation2 + $0x40] sm:$0xff]
    %v106 = vld [vmem:[#allocation2 + $0x48] sm:$0xff]
    %v107 = vld [vmem:[#allocation2 + $0x50] sm:$0xff]
    %v108 = vld [vmem:[#allocation2 + $0x58] sm:$0xff]
    %v109 = vld [vmem:[#allocation2 + $0x60] sm:$0xff]
    %v110 = vld [vmem:[#allocation2 + $0x68] sm:$0xff]
    %v111 = vld [vmem:[#allocation2 + $0x70] sm:$0xff]
    %v112 = vld [vmem:[#allocation2 + $0x78] sm:$0xff]
    %v113 = vld [vmem:[#allocation2 + $0x80] sm:$0xff]
    %v114 = vld [vmem:[#allocation2 + $0x88] sm:$0xff]
    %v115 = vld [vmem:[#allocation2 + $0x90] sm:$0xff]
    %v116 = vld [vmem:[#allocation2 + $0x98] sm:$0xff]
    %v117 = vld [vmem:[#allocation2 + $0xa0] sm:$0xff]
    %v118 = vld [vmem:[#allocation2 + $0xa8] sm:$0xff]
    %v119 = vld [vmem:[#allocation2 + $0xb0] sm:$0xff]
    %v120 = vld [vmem:[#allocation2 + $0xb8] sm:$0xff]
    %v121 = vld [vmem:[#allocation2 + $0xc0] sm:$0xff]
    %v122 = vld [vmem:[#allocation2 + $0xc8] sm:$0xff]
    %v123 = vld [vmem:[#allocation2 + $0xd0] sm:$0xff]
    %v124 = vld [vmem:[#allocation2 + $0xd8] sm:$0xff]
    %v125 = vld [vmem:[#allocation2 + $0xe0] sm:$0xff]
    %v126 = vld [vmem:[#allocation2 + $0xe8] sm:$0xff]
    %v127 = vld [vmem:[#allocation2 + $0xf0] sm:$0xff]
    %v128 = vld [vmem:[#allocation2 + $0xf8] sm:$0xff]
    %v129 = vld [vmem:[%s10] sm:$0x3]
    %v130 = vld [vmem:[%s11] sm:$0x1]
    %v131 = vld [vmem:[%s12] sm:$0xff]
    %v132 = vld [vmem:[%s12 + $0x8] sm:$0xff]
    %v133 = vld [vmem:[%s13] sm:$0xff]
    %v134 = vld [vmem:[%s13 + $0x8] sm:$0xff]
    %v135 = vld [vmem:[%s14] sm:$0x1]
    %v136 = vld [vmem:[%s15] sm:$0x1]
    %v137 = vld [vmem:[%s16] sm:$0xff]
    %v138 = vld [vmem:[%s16 + $0x8] sm:$0xff]
    %v139 = vld [vmem:[%s17] sm:$0xff]
    %v140 = vld [vmem:[%s17 + $0x8] sm:$0xff]
    %v141 = vld [vmem:[%s18] sm:$0x1]
    %v142 = vlaneseq
    %v143 = vshrl.u32 %v142, 7
    %v144 = vadd.s32 %v143, 8
    %v145 = vlaneseq
    %v146 = vand.u32 %v145, 127
    %v147 = vadd.s32 %v146, 128
    %v148 = vmul.u32 %v143, 16
    %v149 = vmul.u32 %v144, 16
    %vm150 = vcmp.ge.s32.totalorder %v146, %v148
    %vm151 = vcmp.ge.s32.totalorder %v147, %v148
    %vm152 = vcmp.ge.s32.totalorder %v146, %v149
    %vm153 = vcmp.ge.s32.totalorder %v147, %v149
    %v154 = vadd.s32 %v143, 1
    %v155 = vadd.s32 %v144, 1
    %v156 = vmul.u32 %v154, 16
    %v157 = vmul.u32 %v155, 16
    %vm158 = vcmp.lt.s32.totalorder %v146, %v156
    %vm159 = vcmp.lt.s32.totalorder %v147, %v156
    %vm160 = vcmp.lt.s32.totalorder %v146, %v157
    %vm161 = vcmp.lt.s32.totalorder %v147, %v157
    %vm162 = vmand %vm150, %vm158
    %vm163 = vmand %vm151, %vm159
    %vm164 = vmand %vm152, %vm160
    %vm165 = vmand %vm153, %vm161
    %v166 = vsel %vm162, 1, 0
    %v167 = vsel %vm163, 1, 0
    %v168 = vsel %vm164, 1, 0
    %v169 = vsel %vm165, 1, 0
    %v170 = vcvt.s32.f32 %v166
    %v171 = vcvt.s32.f32 %v167
    %v172 = vcvt.s32.f32 %v168
    %v173 = vcvt.s32.f32 %v169
    %vm174 = vcmp.eq.s32.totalorder %v143, %v146
    %vm175 = vcmp.eq.s32.totalorder %v144, %v146
    %v176 = vsel %vm174, 1, 0
    %v177 = vsel %vm175, 1, 0
    %v178 = vcvt.s32.f32 %v176
    %v179 = vcvt.s32.f32 %v177
    %v181 = vperm.slane %v94, 0
    %vm183 = vcmask 64512
    %v185 = vsel %vm183, %v82, 0
    %v188 = vsel %vm183, %v83, 0
    %190 = vmatpush.msra.mxu0 0.0
    %191 = vmatpush.msra.mxu0 0.0
    %192 = vmatpush.msra.mxu0 0.0
    %193 = vmatpush.msra.mxu0 0.0
    %194 = vmatpush.msra.mxu0 0.0
    %195 = vmatpush.msra.mxu0 0.0
    %196 = vmatpush.msra.mxu0 0.0
    %197 = vmatpush.msra.mxu0 0.0
    %198 = vmatpush.msra.mxu0 0.0
    %199 = vmatpush.msra.mxu0 0.0
    %200 = vmatpush.msra.mxu0 0.0
    %201 = vmatpush.msra.mxu0 0.0
    %202 = vmatpush.msra.mxu0 0.0
    %203 = vmatpush.msra.mxu0 0.0
    %204 = vmatpush.msra.mxu0 0.0
    %205 = vmatpush.msra.mxu0 %v93
    %206 = vmatmul.f32.gmra.mxu0 %v185
    %v207 = vpop.f32.mrf.mxu0
    %v208 = vadd.f32 %v181, %v207
    %209 = vmatmul.f32.gmra.mxu0 %v188
    %v210 = vpop.f32.mrf.mxu0
    %v211 = vadd.f32 %v181, %v210
    %212 = vdwg.mxu0
    %v213 = vmax.f32 %v208, 0.0
    %v214 = vmax.f32 %v211, 0.0
    %v216 = vperm.slane %v96, 0
    %vm218 = vcmask 39936
    %v220 = vsel %vm218, %v84, 0
    %v223 = vsel %vm218, %v85, 0
    %v226 = vsel %vm218, %v86, 0
    %vm228 = vcmask 1044480
    %v230 = vsel %vm228, %v95, 0
    %232 = vmatpush.msra.mxu0 0.0
    %233 = vmatpush.msra.mxu0 0.0
    %234 = vmatpush.msra.mxu0 0.0
    %235 = vmatpush.msra.mxu0 0.0
    %236 = vmatpush.msra.mxu0 0.0
    %237 = vmatpush.msra.mxu0 0.0
    %238 = vmatpush.msra.mxu0 0.0
    %239 = vmatpush.msra.mxu0 0.0
    %240 = vmatpush.msra.mxu0 0.0
    %241 = vmatpush.msra.mxu0 0.0
    %242 = vmatpush.msra.mxu0 0.0
    %243 = vmatpush.msra.mxu0 0.0
    %244 = vmatpush.msra.mxu0 0.0
    %245 = vmatpush.msra.mxu0 0.0
    %246 = vmatpush.msra.mxu0 0.0
    %247 = vmatpush.msra.mxu0 %v230
    %248 = vmatmul.f32.gmra.mxu0 %v220
    %v249 = vpop.f32.mrf.mxu0
    %v250 = vadd.f32 %v216, %v249
    %251 = vmatmul.f32.gmra.mxu0 %v223
    %v252 = vpop.f32.mrf.mxu0
    %v253 = vadd.f32 %v216, %v252
    %254 = vmatmul.f32.gmra.mxu0 %v226
    %v255 = vpop.f32.mrf.mxu0
    %v256 = vadd.f32 %v216, %v255
    %257 = vdwg.mxu0
    %v258 = vmax.f32 %v250, 0.0
    %v259 = vmax.f32 %v253, 0.0
    %v260 = vmax.f32 %v256, 0.0
    %v262 = vperm.slane %v129, 0
    %v263 = vperm.slane %v129, 1
    %266 = vmatpush.msra.mxu0 %v127
    %267 = vmatpush.msra.mxu0 %v125
    %268 = vmatpush.msra.mxu0 %v123
    %269 = vmatpush.msra.mxu0 %v121
    %270 = vmatpush.msra.mxu0 %v119
    %271 = vmatpush.msra.mxu0 %v117
    %272 = vmatpush.msra.mxu0 %v115
    %273 = vmatpush.msra.mxu0 %v113
    %274 = vmatpush.msra.mxu0 %v111
    %275 = vmatpush.msra.mxu0 %v109
    %276 = vmatpush.msra.mxu0 %v107
    %277 = vmatpush.msra.mxu0 %v105
    %278 = vmatpush.msra.mxu0 %v103
    %279 = vmatpush.msra.mxu0 %v101
    %280 = vmatpush.msra.mxu0 %v99
    %281 = vmatpush.msra.mxu0 %v97
    %282 = vmatmul.f32.gmra.mxu0 %v258
    %v283 = vpop.f32.mrf.mxu0
    %v284 = vadd.f32 %v262, %v283
    %285 = vmatmul.f32.gmra.mxu0 %v259
    %v286 = vpop.f32.mrf.mxu0
    %v287 = vadd.f32 %v262, %v286
    %288 = vmatmul.f32.gmra.mxu0 %v260
    %v289 = vpop.f32.mrf.mxu0
    %v290 = vadd.f32 %v262, %v289
    %291 = vdwg.mxu0
    %292 = vmatpush.msra.mxu0 %v128
    %293 = vmatpush.msra.mxu0 %v126
    %294 = vmatpush.msra.mxu0 %v124
    %295 = vmatpush.msra.mxu0 %v122
    %296 = vmatpush.msra.mxu0 %v120
    %297 = vmatpush.msra.mxu0 %v118
    %298 = vmatpush.msra.mxu0 %v116
    %299 = vmatpush.msra.mxu0 %v114
    %300 = vmatpush.msra.mxu0 %v112
    %301 = vmatpush.msra.mxu0 %v110
    %302 = vmatpush.msra.mxu0 %v108
    %303 = vmatpush.msra.mxu0 %v106
    %304 = vmatpush.msra.mxu0 %v104
    %305 = vmatpush.msra.mxu0 %v102
    %306 = vmatpush.msra.mxu0 %v100
    %307 = vmatpush.msra.mxu0 %v98
    %308 = vmatmul.f32.gmra.mxu0 %v258
    %v309 = vpop.f32.mrf.mxu0
    %v310 = vadd.f32 %v263, %v309
    %311 = vmatmul.f32.gmra.mxu0 %v259
    %v312 = vpop.f32.mrf.mxu0
    %v313 = vadd.f32 %v263, %v312
    %314 = vmatmul.f32.gmra.mxu0 %v260
    %v315 = vpop.f32.mrf.mxu0
    %v316 = vadd.f32 %v263, %v315
    %317 = vdwg.mxu0
    %vm318 = vcmask 97280
    %v320 = vsel %vm318, %v87, 0
    %v323 = vsel %vm318, %v88, 0
    %v326 = vsel %vm318, %v89, 0
    %vm328 = vcmask 1043456
    %v330 = vsel %vm328, %v214, 0
    %332 = vmatpush.msra.mxu0 0.0
    %333 = vmatpush.msra.mxu0 0.0
    %334 = vmatpush.msra.mxu0 0.0
    %335 = vmatpush.msra.mxu0 0.0
    %336 = vmatpush.msra.mxu0 0.0
    %337 = vmatpush.msra.mxu0 0.0
    %338 = vmatpush.msra.mxu0 0.0
    %339 = vmatpush.msra.mxu0 0.0
    %340 = vmatpush.msra.mxu0 0.0
    %341 = vmatpush.msra.mxu0 0.0
    %342 = vmatpush.msra.mxu0 0.0
    %343 = vmatpush.msra.mxu0 0.0
    %344 = vmatpush.msra.mxu0 0.0
    %345 = vmatpush.msra.mxu0 0.0
    %346 = vmatpush.msra.mxu0 %v330
    %347 = vmatpush.msra.mxu0 %v213
    %348 = vmatmul.f32.gmra.mxu0 %v320
    %v349 = vpop.f32.mrf.mxu0
    %v350 = vadd.f32 0.0, %v349
    %351 = vmatmul.f32.gmra.mxu0 %v323
    %v352 = vpop.f32.mrf.mxu0
    %v353 = vadd.f32 0.0, %v352
    %354 = vmatmul.f32.gmra.mxu0 %v326
    %v355 = vpop.f32.mrf.mxu0
    %v356 = vadd.f32 0.0, %v355
    %357 = vdwg.mxu0
    %vm358 = vcmask 130048
    %v360 = vsel %vm358, %v350, 0
    %v363 = vsel %vm358, %v353, 0
    %v366 = vsel %vm358, %v356, 0
    %368 = vmatpush.msra.mxu0 0.0
    %369 = vmatpush.msra.mxu0 0.0
    %370 = vmatpush.msra.mxu0 0.0
    %371 = vmatpush.msra.mxu0 0.0
    %372 = vmatpush.msra.mxu0 0.0
    %373 = vmatpush.msra.mxu0 0.0
    %374 = vmatpush.msra.mxu0 0.0
    %375 = vmatpush.msra.mxu0 0.0
    %376 = vmatpush.msra.mxu0 0.0
    %377 = vmatpush.msra.mxu0 0.0
    %378 = vmatpush.msra.mxu0 0.0
    %379 = vmatpush.msra.mxu0 0.0
    %380 = vmatpush.msra.mxu0 0.0
    %381 = vmatpush.msra.mxu0 0.0
    %382 = vmatpush.msra.mxu0 %v172
    %383 = vmatpush.msra.mxu0 %v170
    %384 = vmatmul.f32.gmra.mxu0 %v360
    %v385 = vpop.f32.mrf.mxu0
    %v386 = vadd.f32 0.0, %v385
    %387 = vmatmul.f32.gmra.mxu0 %v363
    %v388 = vpop.f32.mrf.mxu0
    %v389 = vadd.f32 0.0, %v388
    %390 = vmatmul.f32.gmra.mxu0 %v366
    %v391 = vpop.f32.mrf.mxu0
    %v392 = vadd.f32 0.0, %v391
    %393 = vdwg.mxu0
    %394 = vmatpush.msra.mxu0 0.0
    %395 = vmatpush.msra.mxu0 0.0
    %396 = vmatpush.msra.mxu0 0.0
    %397 = vmatpush.msra.mxu0 0.0
    %398 = vmatpush.msra.mxu0 0.0
    %399 = vmatpush.msra.mxu0 0.0
    %400 = vmatpush.msra.mxu0 0.0
    %401 = vmatpush.msra.mxu0 0.0
    %402 = vmatpush.msra.mxu0 0.0
    %403 = vmatpush.msra.mxu0 0.0
    %404 = vmatpush.msra.mxu0 0.0
    %405 = vmatpush.msra.mxu0 0.0
    %406 = vmatpush.msra.mxu0 0.0
    %407 = vmatpush.msra.mxu0 0.0
    %408 = vmatpush.msra.mxu0 %v173
    %409 = vmatpush.msra.mxu0 %v171
    %410 = vmatmul.f32.gmra.mxu0 %v360
    %v411 = vpop.f32.mrf.mxu0
    %v412 = vadd.f32 0.0, %v411
    %413 = vmatmul.f32.gmra.mxu0 %v363
    %v414 = vpop.f32.mrf.mxu0
    %v415 = vadd.f32 0.0, %v414
    %416 = vmatmul.f32.gmra.mxu0 %v366
    %v417 = vpop.f32.mrf.mxu0
    %v418 = vadd.f32 0.0, %v417
    %419 = vdwg.mxu0
    %v420 = vmul.f32 %v386, %v284
    %v421 = vmul.f32 %v412, %v310
    %v422 = vmul.f32 %v389, %v287
    %v423 = vmul.f32 %v415, %v313
    %v424 = vmul.f32 %v392, %v290
    %v425 = vmul.f32 %v418, %v316
    %426 = vmatpush.msra.mxu0 %v179
    %427 = vmatpush.msra.mxu0 %v178
    %428 = vmatpush.msra.mxu0 %v179
    %429 = vmatpush.msra.mxu0 %v178
    %430 = vmatpush.msra.mxu0 %v179
    %431 = vmatpush.msra.mxu0 %v178
    %432 = vmatpush.msra.mxu0 %v179
    %433 = vmatpush.msra.mxu0 %v178
    %434 = vmatpush.msra.mxu0 %v179
    %435 = vmatpush.msra.mxu0 %v178
    %436 = vmatpush.msra.mxu0 %v179
    %437 = vmatpush.msra.mxu0 %v178
    %438 = vmatpush.msra.mxu0 %v179
    %439 = vmatpush.msra.mxu0 %v178
    %440 = vmatpush.msra.mxu0 %v179
    %441 = vmatpush.msra.mxu0 %v178
    %442 = vmatmul.f32.gmra.mxu0 %v420
    %v443 = vpop.f32.mrf.mxu0
    %v444 = vadd.f32 0.0, %v443
    %445 = vmatmul.f32.gmra.mxu0 %v422
    %v446 = vpop.f32.mrf.mxu0
    %v447 = vadd.f32 0.0, %v446
    %448 = vmatmul.f32.gmra.mxu0 %v424
    %v449 = vpop.f32.mrf.mxu0
    %v450 = vadd.f32 0.0, %v449
    %451 = vdwg.mxu0
    %452 = vmatpush.msra.mxu0 %v179
    %453 = vmatpush.msra.mxu0 %v178
    %454 = vmatpush.msra.mxu0 %v179
    %455 = vmatpush.msra.mxu0 %v178
    %456 = vmatpush.msra.mxu0 %v179
    %457 = vmatpush.msra.mxu0 %v178
    %458 = vmatpush.msra.mxu0 %v179
    %459 = vmatpush.msra.mxu0 %v178
    %460 = vmatpush.msra.mxu0 %v179
    %461 = vmatpush.msra.mxu0 %v178
    %462 = vmatpush.msra.mxu0 %v179
    %463 = vmatpush.msra.mxu0 %v178
    %464 = vmatpush.msra.mxu0 %v179
    %465 = vmatpush.msra.mxu0 %v178
    %466 = vmatpush.msra.mxu0 %v179
    %467 = vmatpush.msra.mxu0 %v178
    %468 = vmatmul.f32.gmra.mxu0 %v421
    %v469 = vpop.f32.mrf.mxu0
    %v470 = vadd.f32 %v444, %v469
    %471 = vmatmul.f32.gmra.mxu0 %v423
    %v472 = vpop.f32.mrf.mxu0
    %v473 = vadd.f32 %v447, %v472
    %474 = vmatmul.f32.gmra.mxu0 %v425
    %v475 = vpop.f32.mrf.mxu0
    %v476 = vadd.f32 %v450, %v475
    %477 = vdwg.mxu0
    %v479 = vperm.slane %v130, 0
    %vm481 = vcmask 195584
    %v483 = vsel %vm481, %v90, 0
    %v486 = vsel %vm481, %v91, 0
    %488 = vmatpush.msra.mxu0 0.0
    %489 = vmatpush.msra.mxu0 0.0
    %490 = vmatpush.msra.mxu0 0.0
    %491 = vmatpush.msra.mxu0 0.0
    %492 = vmatpush.msra.mxu0 0.0
    %493 = vmatpush.msra.mxu0 0.0
    %494 = vmatpush.msra.mxu0 0.0
    %495 = vmatpush.msra.mxu0 0.0
    %496 = vmatpush.msra.mxu0 0.0
    %497 = vmatpush.msra.mxu0 0.0
    %498 = vmatpush.msra.mxu0 0.0
    %499 = vmatpush.msra.mxu0 0.0
    %500 = vmatpush.msra.mxu0 0.0
    %501 = vmatpush.msra.mxu0 %v476
    %502 = vmatpush.msra.mxu0 %v473
    %503 = vmatpush.msra.mxu0 %v470
    %504 = vmatmul.f32.gmra.mxu0 %v483
    %v505 = vpop.f32.mrf.mxu0
    %v506 = vadd.f32 %v479, %v505
    %507 = vmatmul.f32.gmra.mxu0 %v486
    %v508 = vpop.f32.mrf.mxu0
    %v509 = vadd.f32 %v479, %v508
    %510 = vdwg.mxu0
    %v511 = vmax.f32 %v506, 0.0
    %v512 = vmax.f32 %v509, 0.0
    %v514 = vperm.slane %v135, 0
    %v517 = vsel %vm358, %v511, 0
    %v520 = vsel %vm358, %v512, 0
    %522 = vmatpush.msra.mxu0 0.0
    %523 = vmatpush.msra.mxu0 0.0
    %524 = vmatpush.msra.mxu0 0.0
    %525 = vmatpush.msra.mxu0 0.0
    %526 = vmatpush.msra.mxu0 0.0
    %527 = vmatpush.msra.mxu0 0.0
    %528 = vmatpush.msra.mxu0 0.0
    %529 = vmatpush.msra.mxu0 0.0
    %530 = vmatpush.msra.mxu0 0.0
    %531 = vmatpush.msra.mxu0 0.0
    %532 = vmatpush.msra.mxu0 0.0
    %533 = vmatpush.msra.mxu0 0.0
    %534 = vmatpush.msra.mxu0 0.0
    %535 = vmatpush.msra.mxu0 0.0
    %536 = vmatpush.msra.mxu0 %v132
    %537 = vmatpush.msra.mxu0 %v131
    %538 = vmatmul.f32.gmra.mxu0 %v517
    %v539 = vpop.f32.mrf.mxu0
    %v540 = vadd.f32 %v514, %v539
    %541 = vmatmul.f32.gmra.mxu0 %v520
    %v542 = vpop.f32.mrf.mxu0
    %v543 = vadd.f32 %v514, %v542
    %544 = vdwg.mxu0
    %v546 = vperm.slane %v136, 0
    %v549 = vsel %vm358, %v213, 0
    %v551 = vsel %vm358, %v214, 0
    %553 = vmatpush.msra.mxu0 0.0
    %554 = vmatpush.msra.mxu0 0.0
    %555 = vmatpush.msra.mxu0 0.0
    %556 = vmatpush.msra.mxu0 0.0
    %557 = vmatpush.msra.mxu0 0.0
    %558 = vmatpush.msra.mxu0 0.0
    %559 = vmatpush.msra.mxu0 0.0
    %560 = vmatpush.msra.mxu0 0.0
    %561 = vmatpush.msra.mxu0 0.0
    %562 = vmatpush.msra.mxu0 0.0
    %563 = vmatpush.msra.mxu0 0.0
    %564 = vmatpush.msra.mxu0 0.0
    %565 = vmatpush.msra.mxu0 0.0
    %566 = vmatpush.msra.mxu0 0.0
    %567 = vmatpush.msra.mxu0 %v134
    %568 = vmatpush.msra.mxu0 %v133
    %569 = vmatmul.f32.gmra.mxu0 %v549
    %v570 = vpop.f32.mrf.mxu0
    %v571 = vadd.f32 %v546, %v570
    %572 = vmatmul.f32.gmra.mxu0 %v551
    %v573 = vpop.f32.mrf.mxu0
    %v574 = vadd.f32 %v546, %v573
    %575 = vdwg.mxu0
    %v576 = vadd.f32 %v540, %v571
    %v577 = vadd.f32 %v543, %v574
    %v578 = vxor.u32 %v576, 2147483648
    %v579 = vxor.u32 %v577, 2147483648
    %v580 = vmul.f32 %v578, 1.442695
    %v581 = vpow.pop %v580
    %v582 = vmul.f32 %v579, 1.442695
    %v583 = vpow.pop %v582
    %v584 = vadd.f32 %v581, 1.0
    %v585 = vadd.f32 %v583, 1.0
    %v586 = vrcp.pop %v584
    %v587 = vmul.f32 %v584, %v586
    %v588 = vsub.f32 1.0, %v587
    %v589 = vmul.f32 %v586, %v588
    %v590 = vadd.f32 %v586, %v589
    %vm591 = vweird.f32 %v584
    %vm592 = vweird.f32 %v586
    %vm593 = vmor %vm591, %vm592
    %v594 = vsel %vm593, %v586, %v590
    %v595 = vand.u32 2147483647, %v584
    %vm596 = vcmp.eq.f32.partialorder %v595, 8.507059e+37
    %v597 = vand.u32 %v584, 2147483648
    %v598 = vor.u32 1.1754944e-38, %v597
    %v599 = vsel %vm596, %v598, %v594
    %v600 = vmul.f32 1.0, %v599
    %v601 = vrcp.pop %v585
    %v602 = vmul.f32 %v585, %v601
    %v603 = vsub.f32 1.0, %v602
    %v604 = vmul.f32 %v601, %v603
    %v605 = vadd.f32 %v601, %v604
    %vm606 = vweird.f32 %v585
    %vm607 = vweird.f32 %v601
    %vm608 = vmor %vm606, %vm607
    %v609 = vsel %vm608, %v601, %v605
    %v610 = vand.u32 2147483647, %v585
    %vm611 = vcmp.eq.f32.partialorder %v610, 8.507059e+37
    %v612 = vand.u32 %v585, 2147483648
    %v613 = vor.u32 1.1754944e-38, %v612
    %v614 = vsel %vm611, %v613, %v609
    %v615 = vmul.f32 1.0, %v614
    %618 = vrot.lane.b32.xlu0 %v571, 96
    %v619 = vpop.permute.xlu0 %618
    %620 = vrot.lane.b32.xlu0 %v574, 96
    %v621 = vpop.permute.xlu0 %620
    %v624 = vmul.f32 %v600, %v619
    %v625 = vmul.f32 %v615, %v621
    %628 = vrot.lane.b32.xlu0 %v624, 32
    %v629 = vpop.permute.xlu0 %628
    %630 = vrot.lane.b32.xlu0 %v625, 32
    %v631 = vpop.permute.xlu0 %630
    %v634 = vadd.f32 %v540, %v629
    %v635 = vadd.f32 %v543, %v631
    %v636 = vtanh.pop %v634
    %v637 = vtanh.pop %v635
    %v638 = vsub.f32 1.0, %v600
    %v639 = vsub.f32 1.0, %v615
    %642 = vrot.lane.b32.xlu0 %v636, 112
    %v643 = vpop.permute.xlu0 %642
    %644 = vrot.lane.b32.xlu0 %v637, 112
    %v645 = vpop.permute.xlu0 %644
    %v648 = vmul.f32 %v638, %v643
    %v649 = vmul.f32 %v639, %v645
    %650 = vrot.lane.b32.xlu0 %v213, 16
    %v651 = vpop.permute.xlu0 %650
    %652 = vrot.lane.b32.xlu0 %v214, 16
    %v653 = vpop.permute.xlu0 %652
    %v656 = vmul.f32 %v600, %v651
    %v657 = vmul.f32 %v615, %v653
    %v658 = vadd.f32 %v648, %v656
    %v659 = vadd.f32 %v649, %v657
    %662 = vrot.lane.b32.xlu0 %v658, 112
    %v663 = vpop.permute.xlu0 %662
    %664 = vrot.lane.b32.xlu0 %v659, 112
    %v665 = vpop.permute.xlu0 %664
    %v667 = vsel %vm328, %v665, 0
    %669 = vmatpush.msra.mxu0 0.0
    %670 = vmatpush.msra.mxu0 0.0
    %671 = vmatpush.msra.mxu0 0.0
    %672 = vmatpush.msra.mxu0 0.0
    %673 = vmatpush.msra.mxu0 0.0
    %674 = vmatpush.msra.mxu0 0.0
    %675 = vmatpush.msra.mxu0 0.0
    %676 = vmatpush.msra.mxu0 0.0
    %677 = vmatpush.msra.mxu0 0.0
    %678 = vmatpush.msra.mxu0 0.0
    %679 = vmatpush.msra.mxu0 0.0
    %680 = vmatpush.msra.mxu0 0.0
    %681 = vmatpush.msra.mxu0 0.0
    %682 = vmatpush.msra.mxu0 0.0
    %683 = vmatpush.msra.mxu0 %v667
    %684 = vmatpush.msra.mxu0 %v663
    %685 = vmatmul.f32.gmra.mxu0 %v320
    %v686 = vpop.f32.mrf.mxu0
    %v687 = vadd.f32 0.0, %v686
    %688 = vmatmul.f32.gmra.mxu0 %v323
    %v689 = vpop.f32.mrf.mxu0
    %v690 = vadd.f32 0.0, %v689
    %691 = vmatmul.f32.gmra.mxu0 %v326
    %v692 = vpop.f32.mrf.mxu0
    %v693 = vadd.f32 0.0, %v692
    %694 = vdwg.mxu0
    %v696 = vsel %vm358, %v687, 0
    %v699 = vsel %vm358, %v690, 0
    %v702 = vsel %vm358, %v693, 0
    %704 = vmatpush.msra.mxu0 0.0
    %705 = vmatpush.msra.mxu0 0.0
    %706 = vmatpush.msra.mxu0 0.0
    %707 = vmatpush.msra.mxu0 0.0
    %708 = vmatpush.msra.mxu0 0.0
    %709 = vmatpush.msra.mxu0 0.0
    %710 = vmatpush.msra.mxu0 0.0
    %711 = vmatpush.msra.mxu0 0.0
    %712 = vmatpush.msra.mxu0 0.0
    %713 = vmatpush.msra.mxu0 0.0
    %714 = vmatpush.msra.mxu0 0.0
    %715 = vmatpush.msra.mxu0 0.0
    %716 = vmatpush.msra.mxu0 0.0
    %717 = vmatpush.msra.mxu0 0.0
    %718 = vmatpush.msra.mxu0 %v172
    %719 = vmatpush.msra.mxu0 %v170
    %720 = vmatmul.f32.gmra.mxu0 %v696
    %v721 = vpop.f32.mrf.mxu0
    %v722 = vadd.f32 0.0, %v721
    %723 = vmatmul.f32.gmra.mxu0 %v699
    %v724 = vpop.f32.mrf.mxu0
    %v725 = vadd.f32 0.0, %v724
    %726 = vmatmul.f32.gmra.mxu0 %v702
    %v727 = vpop.f32.mrf.mxu0
    %v728 = vadd.f32 0.0, %v727
    %729 = vdwg.mxu0
    %730 = vmatpush.msra.mxu0 0.0
    %731 = vmatpush.msra.mxu0 0.0
    %732 = vmatpush.msra.mxu0 0.0
    %733 = vmatpush.msra.mxu0 0.0
    %734 = vmatpush.msra.mxu0 0.0
    %735 = vmatpush.msra.mxu0 0.0
    %736 = vmatpush.msra.mxu0 0.0
    %737 = vmatpush.msra.mxu0 0.0
    %738 = vmatpush.msra.mxu0 0.0
    %739 = vmatpush.msra.mxu0 0.0
    %740 = vmatpush.msra.mxu0 0.0
    %741 = vmatpush.msra.mxu0 0.0
    %742 = vmatpush.msra.mxu0 0.0
    %743 = vmatpush.msra.mxu0 0.0
    %744 = vmatpush.msra.mxu0 %v173
    %745 = vmatpush.msra.mxu0 %v171
    %746 = vmatmul.f32.gmra.mxu0 %v696
    %v747 = vpop.f32.mrf.mxu0
    %v748 = vadd.f32 0.0, %v747
    %749 = vmatmul.f32.gmra.mxu0 %v699
    %v750 = vpop.f32.mrf.mxu0
    %v751 = vadd.f32 0.0, %v750
    %752 = vmatmul.f32.gmra.mxu0 %v702
    %v753 = vpop.f32.mrf.mxu0
    %v754 = vadd.f32 0.0, %v753
    %755 = vdwg.mxu0
    %v756 = vmul.f32 %v722, %v284
    %v757 = vmul.f32 %v748, %v310
    %v758 = vmul.f32 %v725, %v287
    %v759 = vmul.f32 %v751, %v313
    %v760 = vmul.f32 %v728, %v290
    %v761 = vmul.f32 %v754, %v316
    %762 = vmatpush.msra.mxu0 %v179
    %763 = vmatpush.msra.mxu0 %v178
    %764 = vmatpush.msra.mxu0 %v179
    %765 = vmatpush.msra.mxu0 %v178
    %766 = vmatpush.msra.mxu0 %v179
    %767 = vmatpush.msra.mxu0 %v178
    %768 = vmatpush.msra.mxu0 %v179
    %769 = vmatpush.msra.mxu0 %v178
    %770 = vmatpush.msra.mxu0 %v179
    %771 = vmatpush.msra.mxu0 %v178
    %772 = vmatpush.msra.mxu0 %v179
    %773 = vmatpush.msra.mxu0 %v178
    %774 = vmatpush.msra.mxu0 %v179
    %775 = vmatpush.msra.mxu0 %v178
    %776 = vmatpush.msra.mxu0 %v179
    %777 = vmatpush.msra.mxu0 %v178
    %778 = vmatmul.f32.gmra.mxu0 %v756
    %v779 = vpop.f32.mrf.mxu0
    %v780 = vadd.f32 0.0, %v779
    %781 = vmatmul.f32.gmra.mxu0 %v758
    %v782 = vpop.f32.mrf.mxu0
    %v783 = vadd.f32 0.0, %v782
    %784 = vmatmul.f32.gmra.mxu0 %v760
    %v785 = vpop.f32.mrf.mxu0
    %v786 = vadd.f32 0.0, %v785
    %787 = vdwg.mxu0
    %788 = vmatpush.msra.mxu0 %v179
    %789 = vmatpush.msra.mxu0 %v178
    %790 = vmatpush.msra.mxu0 %v179
    %791 = vmatpush.msra.mxu0 %v178
    %792 = vmatpush.msra.mxu0 %v179
    %793 = vmatpush.msra.mxu0 %v178
    %794 = vmatpush.msra.mxu0 %v179
    %795 = vmatpush.msra.mxu0 %v178
    %796 = vmatpush.msra.mxu0 %v179
    %797 = vmatpush.msra.mxu0 %v178
    %798 = vmatpush.msra.mxu0 %v179
    %799 = vmatpush.msra.mxu0 %v178
    %800 = vmatpush.msra.mxu0 %v179
    %801 = vmatpush.msra.mxu0 %v178
    %802 = vmatpush.msra.mxu0 %v179
    %803 = vmatpush.msra.mxu0 %v178
    %804 = vmatmul.f32.gmra.mxu0 %v757
    %v805 = vpop.f32.mrf.mxu0
    %v806 = vadd.f32 %v780, %v805
    %807 = vmatmul.f32.gmra.mxu0 %v759
    %v808 = vpop.f32.mrf.mxu0
    %v809 = vadd.f32 %v783, %v808
    %810 = vmatmul.f32.gmra.mxu0 %v761
    %v811 = vpop.f32.mrf.mxu0
    %v812 = vadd.f32 %v786, %v811
    %813 = vdwg.mxu0
    %814 = vmatpush.msra.mxu0 0.0
    %815 = vmatpush.msra.mxu0 0.0
    %816 = vmatpush.msra.mxu0 0.0
    %817 = vmatpush.msra.mxu0 0.0
    %818 = vmatpush.msra.mxu0 0.0
    %819 = vmatpush.msra.mxu0 0.0
    %820 = vmatpush.msra.mxu0 0.0
    %821 = vmatpush.msra.mxu0 0.0
    %822 = vmatpush.msra.mxu0 0.0
    %823 = vmatpush.msra.mxu0 0.0
    %824 = vmatpush.msra.mxu0 0.0
    %825 = vmatpush.msra.mxu0 0.0
    %826 = vmatpush.msra.mxu0 0.0
    %827 = vmatpush.msra.mxu0 %v812
    %828 = vmatpush.msra.mxu0 %v809
    %829 = vmatpush.msra.mxu0 %v806
    %830 = vmatmul.f32.gmra.mxu0 %v483
    %v831 = vpop.f32.mrf.mxu0
    %v832 = vadd.f32 %v479, %v831
    %833 = vmatmul.f32.gmra.mxu0 %v486
    %v834 = vpop.f32.mrf.mxu0
    %v835 = vadd.f32 %v479, %v834
    %836 = vdwg.mxu0
    %v837 = vmax.f32 %v832, 0.0
    %v838 = vmax.f32 %v835, 0.0
    %v840 = vsel %vm358, %v837, 0
    %v843 = vsel %vm358, %v838, 0
    %845 = vmatpush.msra.mxu0 0.0
    %846 = vmatpush.msra.mxu0 0.0
    %847 = vmatpush.msra.mxu0 0.0
    %848 = vmatpush.msra.mxu0 0.0
    %849 = vmatpush.msra.mxu0 0.0
    %850 = vmatpush.msra.mxu0 0.0
    %851 = vmatpush.msra.mxu0 0.0
    %852 = vmatpush.msra.mxu0 0.0
    %853 = vmatpush.msra.mxu0 0.0
    %854 = vmatpush.msra.mxu0 0.0
    %855 = vmatpush.msra.mxu0 0.0
    %856 = vmatpush.msra.mxu0 0.0
    %857 = vmatpush.msra.mxu0 0.0
    %858 = vmatpush.msra.mxu0 0.0
    %859 = vmatpush.msra.mxu0 %v132
    %860 = vmatpush.msra.mxu0 %v131
    %861 = vmatmul.f32.gmra.mxu0 %v840
    %v862 = vpop.f32.mrf.mxu0
    %v863 = vadd.f32 %v514, %v862
    %864 = vmatmul.f32.gmra.mxu0 %v843
    %v865 = vpop.f32.mrf.mxu0
    %v866 = vadd.f32 %v514, %v865
    %867 = vdwg.mxu0
    %v868 = vsel %vm358, %v663, 0
    %v870 = vsel %vm358, %v665, 0
    %872 = vmatpush.msra.mxu0 0.0
    %873 = vmatpush.msra.mxu0 0.0
    %874 = vmatpush.msra.mxu0 0.0
    %875 = vmatpush.msra.mxu0 0.0
    %876 = vmatpush.msra.mxu0 0.0
    %877 = vmatpush.msra.mxu0 0.0
    %878 = vmatpush.msra.mxu0 0.0
    %879 = vmatpush.msra.mxu0 0.0
    %880 = vmatpush.msra.mxu0 0.0
    %881 = vmatpush.msra.mxu0 0.0
    %882 = vmatpush.msra.mxu0 0.0
    %883 = vmatpush.msra.mxu0 0.0
    %884 = vmatpush.msra.mxu0 0.0
    %885 = vmatpush.msra.mxu0 0.0
    %886 = vmatpush.msra.mxu0 %v134
    %887 = vmatpush.msra.mxu0 %v133
    %888 = vmatmul.f32.gmra.mxu0 %v868
    %v889 = vpop.f32.mrf.mxu0
    %v890 = vadd.f32 %v546, %v889
    %891 = vmatmul.f32.gmra.mxu0 %v870
    %v892 = vpop.f32.mrf.mxu0
    %v893 = vadd.f32 %v546, %v892
    %894 = vdwg.mxu0
    %v895 = vadd.f32 %v863, %v890
    %v896 = vadd.f32 %v866, %v893
    %v897 = vxor.u32 %v895, 2147483648
    %v898 = vxor.u32 %v896, 2147483648
    %v899 = vmul.f32 %v897, 1.442695
    %v900 = vpow.pop %v899
    %v901 = vmul.f32 %v898, 1.442695
    %v902 = vpow.pop %v901
    %v903 = vadd.f32 %v900, 1.0
    %v904 = vadd.f32 %v902, 1.0
    %v905 = vrcp.pop %v903
    %v906 = vmul.f32 %v903, %v905
    %v907 = vsub.f32 1.0, %v906
    %v908 = vmul.f32 %v905, %v907
    %v909 = vadd.f32 %v905, %v908
    %vm910 = vweird.f32 %v903
    %vm911 = vweird.f32 %v905
    %vm912 = vmor %vm910, %vm911
    %v913 = vsel %vm912, %v905, %v909
    %v914 = vand.u32 2147483647, %v903
    %vm915 = vcmp.eq.f32.partialorder %v914, 8.507059e+37
    %v916 = vand.u32 %v903, 2147483648
    %v917 = vor.u32 1.1754944e-38, %v916
    %v918 = vsel %vm915, %v917, %v913
    %v919 = vmul.f32 1.0, %v918
    %v920 = vrcp.pop %v904
    %v921 = vmul.f32 %v904, %v920
    %v922 = vsub.f32 1.0, %v921
    %v923 = vmul.f32 %v920, %v922
    %v924 = vadd.f32 %v920, %v923
    %vm925 = vweird.f32 %v904
    %vm926 = vweird.f32 %v920
    %vm927 = vmor %vm925, %vm926
    %v928 = vsel %vm927, %v920, %v924
    %v929 = vand.u32 2147483647, %v904
    %vm930 = vcmp.eq.f32.partialorder %v929, 8.507059e+37
    %v931 = vand.u32 %v904, 2147483648
    %v932 = vor.u32 1.1754944e-38, %v931
    %v933 = vsel %vm930, %v932, %v928
    %v934 = vmul.f32 1.0, %v933
    %937 = vrot.lane.b32.xlu0 %v890, 96
    %v938 = vpop.permute.xlu0 %937
    %939 = vrot.lane.b32.xlu0 %v893, 96
    %v940 = vpop.permute.xlu0 %939
    %v943 = vmul.f32 %v919, %v938
    %v944 = vmul.f32 %v934, %v940
    %947 = vrot.lane.b32.xlu0 %v943, 32
    %v948 = vpop.permute.xlu0 %947
    %949 = vrot.lane.b32.xlu0 %v944, 32
    %v950 = vpop.permute.xlu0 %949
    %v953 = vadd.f32 %v863, %v948
    %v954 = vadd.f32 %v866, %v950
    %v955 = vtanh.pop %v953
    %v956 = vtanh.pop %v954
    %v957 = vsub.f32 1.0, %v919
    %v958 = vsub.f32 1.0, %v934
    %961 = vrot.lane.b32.xlu0 %v955, 112
    %v962 = vpop.permute.xlu0 %961
    %963 = vrot.lane.b32.xlu0 %v956, 112
    %v964 = vpop.permute.xlu0 %963
    %v967 = vmul.f32 %v957, %v962
    %v968 = vmul.f32 %v958, %v964
    %v969 = vmul.f32 %v919, %v658
    %v970 = vmul.f32 %v934, %v659
    %v971 = vadd.f32 %v967, %v969
    %v972 = vadd.f32 %v968, %v970
    %975 = vrot.lane.b32.xlu0 %v971, 112
    %v976 = vpop.permute.xlu0 %975
    %977 = vrot.lane.b32.xlu0 %v972, 112
    %v978 = vpop.permute.xlu0 %977
    %v980 = vsel %vm328, %v978, 0
    %982 = vmatpush.msra.mxu0 0.0
    %983 = vmatpush.msra.mxu0 0.0
    %984 = vmatpush.msra.mxu0 0.0
    %985 = vmatpush.msra.mxu0 0.0
    %986 = vmatpush.msra.mxu0 0.0
    %987 = vmatpush.msra.mxu0 0.0
    %988 = vmatpush.msra.mxu0 0.0
    %989 = vmatpush.msra.mxu0 0.0
    %990 = vmatpush.msra.mxu0 0.0
    %991 = vmatpush.msra.mxu0 0.0
    %992 = vmatpush.msra.mxu0 0.0
    %993 = vmatpush.msra.mxu0 0.0
    %994 = vmatpush.msra.mxu0 0.0
    %995 = vmatpush.msra.mxu0 0.0
    %996 = vmatpush.msra.mxu0 %v980
    %997 = vmatpush.msra.mxu0 %v976
    %998 = vmatmul.f32.gmra.mxu0 %v320
    %v999 = vpop.f32.mrf.mxu0
    %v1000 = vadd.f32 0.0, %v999
    %1001 = vmatmul.f32.gmra.mxu0 %v323
    %v1002 = vpop.f32.mrf.mxu0
    %v1003 = vadd.f32 0.0, %v1002
    %1004 = vmatmul.f32.gmra.mxu0 %v326
    %v1005 = vpop.f32.mrf.mxu0
    %v1006 = vadd.f32 0.0, %v1005
    %1007 = vdwg.mxu0
    %v1009 = vsel %vm358, %v1000, 0
    %v1012 = vsel %vm358, %v1003, 0
    %v1015 = vsel %vm358, %v1006, 0
    %1017 = vmatpush.msra.mxu0 0.0
    %1018 = vmatpush.msra.mxu0 0.0
    %1019 = vmatpush.msra.mxu0 0.0
    %1020 = vmatpush.msra.mxu0 0.0
    %1021 = vmatpush.msra.mxu0 0.0
    %1022 = vmatpush.msra.mxu0 0.0
    %1023 = vmatpush.msra.mxu0 0.0
    %1024 = vmatpush.msra.mxu0 0.0
    %1025 = vmatpush.msra.mxu0 0.0
    %1026 = vmatpush.msra.mxu0 0.0
    %1027 = vmatpush.msra.mxu0 0.0
    %1028 = vmatpush.msra.mxu0 0.0
    %1029 = vmatpush.msra.mxu0 0.0
    %1030 = vmatpush.msra.mxu0 0.0
    %1031 = vmatpush.msra.mxu0 %v172
    %1032 = vmatpush.msra.mxu0 %v170
    %1033 = vmatmul.f32.gmra.mxu0 %v1009
    %v1034 = vpop.f32.mrf.mxu0
    %v1035 = vadd.f32 0.0, %v1034
    %1036 = vmatmul.f32.gmra.mxu0 %v1012
    %v1037 = vpop.f32.mrf.mxu0
    %v1038 = vadd.f32 0.0, %v1037
    %1039 = vmatmul.f32.gmra.mxu0 %v1015
    %v1040 = vpop.f32.mrf.mxu0
    %v1041 = vadd.f32 0.0, %v1040
    %1042 = vdwg.mxu0
    %1043 = vmatpush.msra.mxu0 0.0
    %1044 = vmatpush.msra.mxu0 0.0
    %1045 = vmatpush.msra.mxu0 0.0
    %1046 = vmatpush.msra.mxu0 0.0
    %1047 = vmatpush.msra.mxu0 0.0
    %1048 = vmatpush.msra.mxu0 0.0
    %1049 = vmatpush.msra.mxu0 0.0
    %1050 = vmatpush.msra.mxu0 0.0
    %1051 = vmatpush.msra.mxu0 0.0
    %1052 = vmatpush.msra.mxu0 0.0
    %1053 = vmatpush.msra.mxu0 0.0
    %1054 = vmatpush.msra.mxu0 0.0
    %1055 = vmatpush.msra.mxu0 0.0
    %1056 = vmatpush.msra.mxu0 0.0
    %1057 = vmatpush.msra.mxu0 %v173
    %1058 = vmatpush.msra.mxu0 %v171
    %1059 = vmatmul.f32.gmra.mxu0 %v1009
    %v1060 = vpop.f32.mrf.mxu0
    %v1061 = vadd.f32 0.0, %v1060
    %1062 = vmatmul.f32.gmra.mxu0 %v1012
    %v1063 = vpop.f32.mrf.mxu0
    %v1064 = vadd.f32 0.0, %v1063
    %1065 = vmatmul.f32.gmra.mxu0 %v1015
    %v1066 = vpop.f32.mrf.mxu0
    %v1067 = vadd.f32 0.0, %v1066
    %1068 = vdwg.mxu0
    %v1069 = vmul.f32 %v1035, %v284
    %v1070 = vmul.f32 %v1061, %v310
    %v1071 = vmul.f32 %v1038, %v287
    %v1072 = vmul.f32 %v1064, %v313
    %v1073 = vmul.f32 %v1041, %v290
    %v1074 = vmul.f32 %v1067, %v316
    %1075 = vmatpush.msra.mxu0 %v179
    %1076 = vmatpush.msra.mxu0 %v178
    %1077 = vmatpush.msra.mxu0 %v179
    %1078 = vmatpush.msra.mxu0 %v178
    %1079 = vmatpush.msra.mxu0 %v179
    %1080 = vmatpush.msra.mxu0 %v178
    %1081 = vmatpush.msra.mxu0 %v179
    %1082 = vmatpush.msra.mxu0 %v178
    %1083 = vmatpush.msra.mxu0 %v179
    %1084 = vmatpush.msra.mxu0 %v178
    %1085 = vmatpush.msra.mxu0 %v179
    %1086 = vmatpush.msra.mxu0 %v178
    %1087 = vmatpush.msra.mxu0 %v179
    %1088 = vmatpush.msra.mxu0 %v178
    %1089 = vmatpush.msra.mxu0 %v179
    %1090 = vmatpush.msra.mxu0 %v178
    %1091 = vmatmul.f32.gmra.mxu0 %v1069
    %v1092 = vpop.f32.mrf.mxu0
    %v1093 = vadd.f32 0.0, %v1092
    %1094 = vmatmul.f32.gmra.mxu0 %v1071
    %v1095 = vpop.f32.mrf.mxu0
    %v1096 = vadd.f32 0.0, %v1095
    %1097 = vmatmul.f32.gmra.mxu0 %v1073
    %v1098 = vpop.f32.mrf.mxu0
    %v1099 = vadd.f32 0.0, %v1098
    %1100 = vdwg.mxu0
    %1101 = vmatpush.msra.mxu0 %v179
    %1102 = vmatpush.msra.mxu0 %v178
    %1103 = vmatpush.msra.mxu0 %v179
    %1104 = vmatpush.msra.mxu0 %v178
    %1105 = vmatpush.msra.mxu0 %v179
    %1106 = vmatpush.msra.mxu0 %v178
    %1107 = vmatpush.msra.mxu0 %v179
    %1108 = vmatpush.msra.mxu0 %v178
    %1109 = vmatpush.msra.mxu0 %v179
    %1110 = vmatpush.msra.mxu0 %v178
    %1111 = vmatpush.msra.mxu0 %v179
    %1112 = vmatpush.msra.mxu0 %v178
    %1113 = vmatpush.msra.mxu0 %v179
    %1114 = vmatpush.msra.mxu0 %v178
    %1115 = vmatpush.msra.mxu0 %v179
    %1116 = vmatpush.msra.mxu0 %v178
    %1117 = vmatmul.f32.gmra.mxu0 %v1070
    %v1118 = vpop.f32.mrf.mxu0
    %v1119 = vadd.f32 %v1093, %v1118
    %1120 = vmatmul.f32.gmra.mxu0 %v1072
    %v1121 = vpop.f32.mrf.mxu0
    %v1122 = vadd.f32 %v1096, %v1121
    %1123 = vmatmul.f32.gmra.mxu0 %v1074
    %v1124 = vpop.f32.mrf.mxu0
    %v1125 = vadd.f32 %v1099, %v1124
    %1126 = vdwg.mxu0
    %1127 = vmatpush.msra.mxu0 0.0
    %1128 = vmatpush.msra.mxu0 0.0
    %1129 = vmatpush.msra.mxu0 0.0
    %1130 = vmatpush.msra.mxu0 0.0
    %1131 = vmatpush.msra.mxu0 0.0
    %1132 = vmatpush.msra.mxu0 0.0
    %1133 = vmatpush.msra.mxu0 0.0
    %1134 = vmatpush.msra.mxu0 0.0
    %1135 = vmatpush.msra.mxu0 0.0
    %1136 = vmatpush.msra.mxu0 0.0
    %1137 = vmatpush.msra.mxu0 0.0
    %1138 = vmatpush.msra.mxu0 0.0
    %1139 = vmatpush.msra.mxu0 0.0
    %1140 = vmatpush.msra.mxu0 %v1125
    %1141 = vmatpush.msra.mxu0 %v1122
    %1142 = vmatpush.msra.mxu0 %v1119
    %1143 = vmatmul.f32.gmra.mxu0 %v483
    %v1144 = vpop.f32.mrf.mxu0
    %v1145 = vadd.f32 %v479, %v1144
    %1146 = vmatmul.f32.gmra.mxu0 %v486
    %v1147 = vpop.f32.mrf.mxu0
    %v1148 = vadd.f32 %v479, %v1147
    %1149 = vdwg.mxu0
    %v1150 = vmax.f32 %v1145, 0.0
    %v1151 = vmax.f32 %v1148, 0.0
    %v1153 = vsel %vm358, %v1150, 0
    %v1156 = vsel %vm358, %v1151, 0
    %1158 = vmatpush.msra.mxu0 0.0
    %1159 = vmatpush.msra.mxu0 0.0
    %1160 = vmatpush.msra.mxu0 0.0
    %1161 = vmatpush.msra.mxu0 0.0
    %1162 = vmatpush.msra.mxu0 0.0
    %1163 = vmatpush.msra.mxu0 0.0
    %1164 = vmatpush.msra.mxu0 0.0
    %1165 = vmatpush.msra.mxu0 0.0
    %1166 = vmatpush.msra.mxu0 0.0
    %1167 = vmatpush.msra.mxu0 0.0
    %1168 = vmatpush.msra.mxu0 0.0
    %1169 = vmatpush.msra.mxu0 0.0
    %1170 = vmatpush.msra.mxu0 0.0
    %1171 = vmatpush.msra.mxu0 0.0
    %1172 = vmatpush.msra.mxu0 %v132
    %1173 = vmatpush.msra.mxu0 %v131
    %1174 = vmatmul.f32.gmra.mxu0 %v1153
    %v1175 = vpop.f32.mrf.mxu0
    %v1176 = vadd.f32 %v514, %v1175
    %1177 = vmatmul.f32.gmra.mxu0 %v1156
    %v1178 = vpop.f32.mrf.mxu0
    %v1179 = vadd.f32 %v514, %v1178
    %1180 = vdwg.mxu0
    %v1181 = vsel %vm358, %v976, 0
    %v1183 = vsel %vm358, %v978, 0
    %1185 = vmatpush.msra.mxu0 0.0
    %1186 = vmatpush.msra.mxu0 0.0
    %1187 = vmatpush.msra.mxu0 0.0
    %1188 = vmatpush.msra.mxu0 0.0
    %1189 = vmatpush.msra.mxu0 0.0
    %1190 = vmatpush.msra.mxu0 0.0
    %1191 = vmatpush.msra.mxu0 0.0
    %1192 = vmatpush.msra.mxu0 0.0
    %1193 = vmatpush.msra.mxu0 0.0
    %1194 = vmatpush.msra.mxu0 0.0
    %1195 = vmatpush.msra.mxu0 0.0
    %1196 = vmatpush.msra.mxu0 0.0
    %1197 = vmatpush.msra.mxu0 0.0
    %1198 = vmatpush.msra.mxu0 0.0
    %1199 = vmatpush.msra.mxu0 %v134
    %1200 = vmatpush.msra.mxu0 %v133
    %1201 = vmatmul.f32.gmra.mxu0 %v1181
    %v1202 = vpop.f32.mrf.mxu0
    %v1203 = vadd.f32 %v546, %v1202
    %1204 = vmatmul.f32.gmra.mxu0 %v1183
    %v1205 = vpop.f32.mrf.mxu0
    %v1206 = vadd.f32 %v546, %v1205
    %1207 = vdwg.mxu0
    %v1208 = vadd.f32 %v1176, %v1203
    %v1209 = vadd.f32 %v1179, %v1206
    %v1210 = vxor.u32 %v1208, 2147483648
    %v1211 = vxor.u32 %v1209, 2147483648
    %v1212 = vmul.f32 %v1210, 1.442695
    %v1213 = vpow.pop %v1212
    %v1214 = vmul.f32 %v1211, 1.442695
    %v1215 = vpow.pop %v1214
    %v1216 = vadd.f32 %v1213, 1.0
    %v1217 = vadd.f32 %v1215, 1.0
    %v1218 = vrcp.pop %v1216
    %v1219 = vmul.f32 %v1216, %v1218
    %v1220 = vsub.f32 1.0, %v1219
    %v1221 = vmul.f32 %v1218, %v1220
    %v1222 = vadd.f32 %v1218, %v1221
    %vm1223 = vweird.f32 %v1216
    %vm1224 = vweird.f32 %v1218
    %vm1225 = vmor %vm1223, %vm1224
    %v1226 = vsel %vm1225, %v1218, %v1222
    %v1227 = vand.u32 2147483647, %v1216
    %vm1228 = vcmp.eq.f32.partialorder %v1227, 8.507059e+37
    %v1229 = vand.u32 %v1216, 2147483648
    %v1230 = vor.u32 1.1754944e-38, %v1229
    %v1231 = vsel %vm1228, %v1230, %v1226
    %v1232 = vmul.f32 1.0, %v1231
    %v1233 = vrcp.pop %v1217
    %v1234 = vmul.f32 %v1217, %v1233
    %v1235 = vsub.f32 1.0, %v1234
    %v1236 = vmul.f32 %v1233, %v1235
    %v1237 = vadd.f32 %v1233, %v1236
    %vm1238 = vweird.f32 %v1217
    %vm1239 = vweird.f32 %v1233
    %vm1240 = vmor %vm1238, %vm1239
    %v1241 = vsel %vm1240, %v1233, %v1237
    %v1242 = vand.u32 2147483647, %v1217
    %vm1243 = vcmp.eq.f32.partialorder %v1242, 8.507059e+37
    %v1244 = vand.u32 %v1217, 2147483648
    %v1245 = vor.u32 1.1754944e-38, %v1244
    %v1246 = vsel %vm1243, %v1245, %v1241
    %v1247 = vmul.f32 1.0, %v1246
    %1250 = vrot.lane.b32.xlu0 %v1203, 96
    %v1251 = vpop.permute.xlu0 %1250
    %1252 = vrot.lane.b32.xlu0 %v1206, 96
    %v1253 = vpop.permute.xlu0 %1252
    %v1256 = vmul.f32 %v1232, %v1251
    %v1257 = vmul.f32 %v1247, %v1253
    %1260 = vrot.lane.b32.xlu0 %v1256, 32
    %v1261 = vpop.permute.xlu0 %1260
    %1262 = vrot.lane.b32.xlu0 %v1257, 32
    %v1263 = vpop.permute.xlu0 %1262
    %v1266 = vadd.f32 %v1176, %v1261
    %v1267 = vadd.f32 %v1179, %v1263
    %v1268 = vtanh.pop %v1266
    %v1269 = vtanh.pop %v1267
    %v1270 = vsub.f32 1.0, %v1232
    %v1271 = vsub.f32 1.0, %v1247
    %1274 = vrot.lane.b32.xlu0 %v1268, 112
    %v1275 = vpop.permute.xlu0 %1274
    %1276 = vrot.lane.b32.xlu0 %v1269, 112
    %v1277 = vpop.permute.xlu0 %1276
    %v1280 = vmul.f32 %v1270, %v1275
    %v1281 = vmul.f32 %v1271, %v1277
    %v1282 = vmul.f32 %v1232, %v971
    %v1283 = vmul.f32 %v1247, %v972
    %v1284 = vadd.f32 %v1280, %v1282
    %v1285 = vadd.f32 %v1281, %v1283
    %vm1286 = vcmp.gt.f32.partialorder %v92, 0.0
    %v1288 = vsel %vm358, 0.0, 0
    %1290 = vmatpush.msra.mxu0 0.0
    %1291 = vmatpush.msra.mxu0 0.0
    %1292 = vmatpush.msra.mxu0 0.0
    %1293 = vmatpush.msra.mxu0 0.0
    %1294 = vmatpush.msra.mxu0 0.0
    %1295 = vmatpush.msra.mxu0 0.0
    %1296 = vmatpush.msra.mxu0 0.0
    %1297 = vmatpush.msra.mxu0 0.0
    %1298 = vmatpush.msra.mxu0 0.0
    %1299 = vmatpush.msra.mxu0 0.0
    %1300 = vmatpush.msra.mxu0 0.0
    %1301 = vmatpush.msra.mxu0 0.0
    %1302 = vmatpush.msra.mxu0 0.0
    %1303 = vmatpush.msra.mxu0 0.0
    %1304 = vmatpush.msra.mxu0 %v140
    %1305 = vmatpush.msra.mxu0 %v139
    %1306 = vmatmul.f32.gmra.mxu0 %v1288
    %v1307 = vpop.f32.mrf.mxu0
    %v1308 = vadd.f32 0.0, %v1307
    %1309 = vdwg.mxu0
    %1310 = vmatpush.msra.mxu0 0.0
    %1311 = vmatpush.msra.mxu0 0.0
    %1312 = vmatpush.msra.mxu0 0.0
    %1313 = vmatpush.msra.mxu0 0.0
    %1314 = vmatpush.msra.mxu0 0.0
    %1315 = vmatpush.msra.mxu0 0.0
    %1316 = vmatpush.msra.mxu0 0.0
    %1317 = vmatpush.msra.mxu0 0.0
    %1318 = vmatpush.msra.mxu0 0.0
    %1319 = vmatpush.msra.mxu0 0.0
    %1320 = vmatpush.msra.mxu0 0.0
    %1321 = vmatpush.msra.mxu0 0.0
    %1322 = vmatpush.msra.mxu0 0.0
    %1323 = vmatpush.msra.mxu0 0.0
    %1324 = vmatpush.msra.mxu0 %v138
    %1325 = vmatpush.msra.mxu0 %v137
    %1326 = vmatmul.f32.gmra.mxu0 %v1288
    %v1327 = vpop.f32.mrf.mxu0
    %v1328 = vadd.f32 %v1308, %v1327
    %1329 = vdwg.mxu0
    %v1331 = vperm.slane %v141, 0
    %v1333 = vadd.f32 %v1328, %v1331
    %v1334 = vxor.u32 %v1333, 2147483648
    %v1335 = vmul.f32 %v1334, 1.442695
    %v1336 = vpow.pop %v1335
    %v1337 = vadd.f32 %v1336, 1.0
    %v1338 = vrcp.pop %v1337
    %v1339 = vmul.f32 %v1337, %v1338
    %v1340 = vsub.f32 1.0, %v1339
    %v1341 = vmul.f32 %v1338, %v1340
    %v1342 = vadd.f32 %v1338, %v1341
    %vm1343 = vweird.f32 %v1337
    %vm1344 = vweird.f32 %v1338
    %vm1345 = vmor %vm1343, %vm1344
    %v1346 = vsel %vm1345, %v1338, %v1342
    %v1347 = vand.u32 2147483647, %v1337
    %vm1348 = vcmp.eq.f32.partialorder %v1347, 8.507059e+37
    %v1349 = vand.u32 %v1337, 2147483648
    %v1350 = vor.u32 1.1754944e-38, %v1349
    %v1351 = vsel %vm1348, %v1350, %v1346
    %v1352 = vmul.f32 1.0, %v1351
    %v1353 = vtanh.pop %v1333
    %v1354 = vmul.f32 %v1352, 0.0
    %1356 = vrot.lane.b32.xlu0 %v1353, 96
    %v1357 = vpop.permute.xlu0 %1356
    %v1359 = vmul.f32 %v1352, %v1357
    %1361 = vrot.lane.b32.xlu0 %v1359, 16
    %v1362 = vpop.permute.xlu0 %1361
    %v1364 = vadd.f32 %v1354, %v1362
    %v1365 = vtanh.pop %v1364
    %1367 = vrot.lane.b32.xlu0 %v1365, 32
    %v1368 = vpop.permute.xlu0 %1367
    %v1370 = vmul.f32 %v1352, %v1368
    %1372 = vrot.lane.b32.xlu0 %v1370, 80
    %v1373 = vpop.permute.xlu0 %1372
    %1376 = vrot.lane.b32.xlu0 %v1284, 112
    %v1377 = vpop.permute.xlu0 %1376
    %1378 = vrot.lane.b32.xlu0 %v1285, 112
    %v1379 = vpop.permute.xlu0 %1378
    %v1380 = vsel %vm358, %v1373, 0
    %v1382 = vsel %vm358, %v1377, 0
    %v1384 = vsel %vm358, %v1379, 0
    %1386 = vmatpush.xpose.msra.mxu0 0.0
    %1387 = vmatpush.xpose.msra.mxu0 0.0
    %1388 = vmatpush.xpose.msra.mxu0 0.0
    %1389 = vmatpush.xpose.msra.mxu0 0.0
    %1390 = vmatpush.xpose.msra.mxu0 0.0
    %1391 = vmatpush.xpose.msra.mxu0 0.0
    %1392 = vmatpush.xpose.msra.mxu0 0.0
    %1393 = vmatpush.xpose.msra.mxu0 0.0
    %1394 = vmatpush.xpose.msra.mxu0 0.0
    %1395 = vmatpush.xpose.msra.mxu0 0.0
    %1396 = vmatpush.xpose.msra.mxu0 0.0
    %1397 = vmatpush.xpose.msra.mxu0 0.0
    %1398 = vmatpush.xpose.msra.mxu0 0.0
    %1399 = vmatpush.xpose.msra.mxu0 0.0
    %1400 = vmatpush.xpose.msra.mxu0 %v1384
    %1401 = vmatpush.xpose.msra.mxu0 %v1382
    %1402 = vmatmul.f32.gmra.mxu0 %v1380
    %v1403 = vpop.f32.mrf.mxu0
    %v1404 = vadd.f32 0.0, %v1403
    %1405 = vdwg.mxu0
    %v1406 = vsel %vm1286, %v1404, -1e+30
    %vm1407 = vcmask 91136
    %v1408 = vsel %vm1407, %v1406, -inf
    %1409 = vmax.xlane.f32.xlu0 %v1408
    %v1410 = vpop.xlane.xlu0 %1409
    %v1411 = vsub.f32 %v1406, %v1410
    %v1412 = vmul.f32 %v1411, 1.442695
    %v1413 = vpow.pop %v1412
    %v1414 = vmul.f32 %v1413, %v92
    %v1415 = vsel %vm1407, %v1414, 0.0
    %1416 = vadd.xlane.f32.xlu0 %v1415
    %v1417 = vpop.xlane.xlu0 %1416
    %v1418 = vmax.f32 %v1417, 1e-20
    %v1419 = vrcp.pop %v1418
    %v1420 = vmul.f32 %v1418, %v1419
    %v1421 = vsub.f32 1.0, %v1420
    %v1422 = vmul.f32 %v1419, %v1421
    %v1423 = vadd.f32 %v1419, %v1422
    %vm1424 = vweird.f32 %v1418
    %vm1425 = vweird.f32 %v1419
    %vm1426 = vmor %vm1424, %vm1425
    %v1427 = vsel %vm1426, %v1419, %v1423
    %v1428 = vand.u32 2147483647, %v1418
    %vm1429 = vcmp.eq.f32.partialorder %v1428, 8.507059e+37
    %v1430 = vand.u32 %v1418, 2147483648
    %v1431 = vor.u32 1.1754944e-38, %v1430
    %v1432 = vsel %vm1429, %v1431, %v1427
    %v1433 = vmul.f32 %v1414, %v1432
    %v1436 = vsel %vm318, %v1433, 0
    %v1438 = vsel %vm328, %v1379, 0
    %1440 = vmatpush.msra.mxu0 0.0
    %1441 = vmatpush.msra.mxu0 0.0
    %1442 = vmatpush.msra.mxu0 0.0
    %1443 = vmatpush.msra.mxu0 0.0
    %1444 = vmatpush.msra.mxu0 0.0
    %1445 = vmatpush.msra.mxu0 0.0
    %1446 = vmatpush.msra.mxu0 0.0
    %1447 = vmatpush.msra.mxu0 0.0
    %1448 = vmatpush.msra.mxu0 0.0
    %1449 = vmatpush.msra.mxu0 0.0
    %1450 = vmatpush.msra.mxu0 0.0
    %1451 = vmatpush.msra.mxu0 0.0
    %1452 = vmatpush.msra.mxu0 0.0
    %1453 = vmatpush.msra.mxu0 0.0
    %1454 = vmatpush.msra.mxu0 %v1438
    %1455 = vmatpush.msra.mxu0 %v1377
    %1456 = vmatmul.f32.gmra.mxu0 %v1436
    %v1457 = vpop.f32.mrf.mxu0
    %v1458 = vadd.f32 0.0, %v1457
    %1459 = vdwg.mxu0
    %v1461 = vsel %vm358, %v1458, 0
    %1463 = vmatpush.msra.mxu0 0.0
    %1464 = vmatpush.msra.mxu0 0.0
    %1465 = vmatpush.msra.mxu0 0.0
    %1466 = vmatpush.msra.mxu0 0.0
    %1467 = vmatpush.msra.mxu0 0.0
    %1468 = vmatpush.msra.mxu0 0.0
    %1469 = vmatpush.msra.mxu0 0.0
    %1470 = vmatpush.msra.mxu0 0.0
    %1471 = vmatpush.msra.mxu0 0.0
    %1472 = vmatpush.msra.mxu0 0.0
    %1473 = vmatpush.msra.mxu0 0.0
    %1474 = vmatpush.msra.mxu0 0.0
    %1475 = vmatpush.msra.mxu0 0.0
    %1476 = vmatpush.msra.mxu0 0.0
    %1477 = vmatpush.msra.mxu0 %v140
    %1478 = vmatpush.msra.mxu0 %v139
    %1479 = vmatmul.f32.gmra.mxu0 %v1461
    %v1480 = vpop.f32.mrf.mxu0
    %v1481 = vadd.f32 0.0, %v1480
    %1482 = vdwg.mxu0
    %1483 = vmatpush.msra.mxu0 0.0
    %1484 = vmatpush.msra.mxu0 0.0
    %1485 = vmatpush.msra.mxu0 0.0
    %1486 = vmatpush.msra.mxu0 0.0
    %1487 = vmatpush.msra.mxu0 0.0
    %1488 = vmatpush.msra.mxu0 0.0
    %1489 = vmatpush.msra.mxu0 0.0
    %1490 = vmatpush.msra.mxu0 0.0
    %1491 = vmatpush.msra.mxu0 0.0
    %1492 = vmatpush.msra.mxu0 0.0
    %1493 = vmatpush.msra.mxu0 0.0
    %1494 = vmatpush.msra.mxu0 0.0
    %1495 = vmatpush.msra.mxu0 0.0
    %1496 = vmatpush.msra.mxu0 0.0
    %1497 = vmatpush.msra.mxu0 %v138
    %1498 = vmatpush.msra.mxu0 %v137
    %1499 = vmatmul.f32.gmra.mxu0 %v1380
    %v1500 = vpop.f32.mrf.mxu0
    %v1501 = vadd.f32 %v1481, %v1500
    %1502 = vdwg.mxu0
    %v1503 = vadd.f32 %v1501, %v1331
    %v1504 = vxor.u32 %v1503, 2147483648
    %v1505 = vmul.f32 %v1504, 1.442695
    %v1506 = vpow.pop %v1505
    %v1507 = vadd.f32 %v1506, 1.0
    %v1508 = vrcp.pop %v1507
    %v1509 = vmul.f32 %v1507, %v1508
    %v1510 = vsub.f32 1.0, %v1509
    %v1511 = vmul.f32 %v1508, %v1510
    %v1512 = vadd.f32 %v1508, %v1511
    %vm1513 = vweird.f32 %v1507
    %vm1514 = vweird.f32 %v1508
    %vm1515 = vmor %vm1513, %vm1514
    %v1516 = vsel %vm1515, %v1508, %v1512
    %v1517 = vand.u32 2147483647, %v1507
    %vm1518 = vcmp.eq.f32.partialorder %v1517, 8.507059e+37
    %v1519 = vand.u32 %v1507, 2147483648
    %v1520 = vor.u32 1.1754944e-38, %v1519
    %v1521 = vsel %vm1518, %v1520, %v1516
    %v1522 = vmul.f32 1.0, %v1521
    %v1523 = vtanh.pop %v1503
    %v1524 = vmul.f32 %v1522, %v1364
    %1526 = vrot.lane.b32.xlu0 %v1523, 96
    %v1527 = vpop.permute.xlu0 %1526
    %v1529 = vmul.f32 %v1522, %v1527
    %1531 = vrot.lane.b32.xlu0 %v1529, 16
    %v1532 = vpop.permute.xlu0 %1531
    %v1534 = vadd.f32 %v1524, %v1532
    %v1535 = vtanh.pop %v1534
    %1537 = vrot.lane.b32.xlu0 %v1535, 32
    %v1538 = vpop.permute.xlu0 %1537
    %v1540 = vmul.f32 %v1522, %v1538
    %1542 = vrot.lane.b32.xlu0 %v1540, 80
    %v1543 = vpop.permute.xlu0 %1542
    %v1544 = vsel %vm358, %v1543, 0
    %1546 = vmatpush.xpose.msra.mxu0 0.0
    %1547 = vmatpush.xpose.msra.mxu0 0.0
    %1548 = vmatpush.xpose.msra.mxu0 0.0
    %1549 = vmatpush.xpose.msra.mxu0 0.0
    %1550 = vmatpush.xpose.msra.mxu0 0.0
    %1551 = vmatpush.xpose.msra.mxu0 0.0
    %1552 = vmatpush.xpose.msra.mxu0 0.0
    %1553 = vmatpush.xpose.msra.mxu0 0.0
    %1554 = vmatpush.xpose.msra.mxu0 0.0
    %1555 = vmatpush.xpose.msra.mxu0 0.0
    %1556 = vmatpush.xpose.msra.mxu0 0.0
    %1557 = vmatpush.xpose.msra.mxu0 0.0
    %1558 = vmatpush.xpose.msra.mxu0 0.0
    %1559 = vmatpush.xpose.msra.mxu0 0.0
    %1560 = vmatpush.xpose.msra.mxu0 %v1384
    %1561 = vmatpush.xpose.msra.mxu0 %v1382
    %1562 = vmatmul.f32.gmra.mxu0 %v1544
    %v1563 = vpop.f32.mrf.mxu0
    %v1564 = vadd.f32 0.0, %v1563
    %1565 = vdwg.mxu0
    %v1566 = vsel %vm1286, %v1564, -1e+30
    %v1567 = vsel %vm1407, %v1566, -inf
    %1568 = vmax.xlane.f32.xlu0 %v1567
    %v1569 = vpop.xlane.xlu0 %1568
    %v1570 = vsub.f32 %v1566, %v1569
    %v1571 = vmul.f32 %v1570, 1.442695
    %v1572 = vpow.pop %v1571
    %v1573 = vmul.f32 %v1572, %v92
    %v1574 = vsel %vm1407, %v1573, 0.0
    %1575 = vadd.xlane.f32.xlu0 %v1574
    %v1576 = vpop.xlane.xlu0 %1575
    %v1577 = vmax.f32 %v1576, 1e-20
    %v1578 = vrcp.pop %v1577
    %v1579 = vmul.f32 %v1577, %v1578
    %v1580 = vsub.f32 1.0, %v1579
    %v1581 = vmul.f32 %v1578, %v1580
    %v1582 = vadd.f32 %v1578, %v1581
    %vm1583 = vweird.f32 %v1577
    %vm1584 = vweird.f32 %v1578
    %vm1585 = vmor %vm1583, %vm1584
    %v1586 = vsel %vm1585, %v1578, %v1582
    %v1587 = vand.u32 2147483647, %v1577
    %vm1588 = vcmp.eq.f32.partialorder %v1587, 8.507059e+37
    %v1589 = vand.u32 %v1577, 2147483648
    %v1590 = vor.u32 1.1754944e-38, %v1589
    %v1591 = vsel %vm1588, %v1590, %v1586
    %v1592 = vmul.f32 %v1573, %v1591
    %v1594 = vsel %vm318, %v1592, 0
    %1596 = vmatpush.msra.mxu0 0.0
    %1597 = vmatpush.msra.mxu0 0.0
    %1598 = vmatpush.msra.mxu0 0.0
    %1599 = vmatpush.msra.mxu0 0.0
    %1600 = vmatpush.msra.mxu0 0.0
    %1601 = vmatpush.msra.mxu0 0.0
    %1602 = vmatpush.msra.mxu0 0.0
    %1603 = vmatpush.msra.mxu0 0.0
    %1604 = vmatpush.msra.mxu0 0.0
    %1605 = vmatpush.msra.mxu0 0.0
    %1606 = vmatpush.msra.mxu0 0.0
    %1607 = vmatpush.msra.mxu0 0.0
    %1608 = vmatpush.msra.mxu0 0.0
    %1609 = vmatpush.msra.mxu0 0.0
    %1610 = vmatpush.msra.mxu0 %v1438
    %1611 = vmatpush.msra.mxu0 %v1377
    %1612 = vmatmul.f32.gmra.mxu0 %v1594
    %v1613 = vpop.f32.mrf.mxu0
    %v1614 = vadd.f32 0.0, %v1613
    %1615 = vdwg.mxu0
    %v1617 = vsel %vm358, %v1614, 0
    %1619 = vmatpush.msra.mxu0 0.0
    %1620 = vmatpush.msra.mxu0 0.0
    %1621 = vmatpush.msra.mxu0 0.0
    %1622 = vmatpush.msra.mxu0 0.0
    %1623 = vmatpush.msra.mxu0 0.0
    %1624 = vmatpush.msra.mxu0 0.0
    %1625 = vmatpush.msra.mxu0 0.0
    %1626 = vmatpush.msra.mxu0 0.0
    %1627 = vmatpush.msra.mxu0 0.0
    %1628 = vmatpush.msra.mxu0 0.0
    %1629 = vmatpush.msra.mxu0 0.0
    %1630 = vmatpush.msra.mxu0 0.0
    %1631 = vmatpush.msra.mxu0 0.0
    %1632 = vmatpush.msra.mxu0 0.0
    %1633 = vmatpush.msra.mxu0 %v140
    %1634 = vmatpush.msra.mxu0 %v139
    %1635 = vmatmul.f32.gmra.mxu0 %v1617
    %v1636 = vpop.f32.mrf.mxu0
    %v1637 = vadd.f32 0.0, %v1636
    %1638 = vdwg.mxu0
    %1639 = vmatpush.msra.mxu0 0.0
    %1640 = vmatpush.msra.mxu0 0.0
    %1641 = vmatpush.msra.mxu0 0.0
    %1642 = vmatpush.msra.mxu0 0.0
    %1643 = vmatpush.msra.mxu0 0.0
    %1644 = vmatpush.msra.mxu0 0.0
    %1645 = vmatpush.msra.mxu0 0.0
    %1646 = vmatpush.msra.mxu0 0.0
    %1647 = vmatpush.msra.mxu0 0.0
    %1648 = vmatpush.msra.mxu0 0.0
    %1649 = vmatpush.msra.mxu0 0.0
    %1650 = vmatpush.msra.mxu0 0.0
    %1651 = vmatpush.msra.mxu0 0.0
    %1652 = vmatpush.msra.mxu0 0.0
    %1653 = vmatpush.msra.mxu0 %v138
    %1654 = vmatpush.msra.mxu0 %v137
    %1655 = vmatmul.f32.gmra.mxu0 %v1544
    %v1656 = vpop.f32.mrf.mxu0
    %v1657 = vadd.f32 %v1637, %v1656
    %1658 = vdwg.mxu0
    %v1659 = vadd.f32 %v1657, %v1331
    %v1660 = vxor.u32 %v1659, 2147483648
    %v1661 = vmul.f32 %v1660, 1.442695
    %v1662 = vpow.pop %v1661
    %v1663 = vadd.f32 %v1662, 1.0
    %v1664 = vrcp.pop %v1663
    %v1665 = vmul.f32 %v1663, %v1664
    %v1666 = vsub.f32 1.0, %v1665
    %v1667 = vmul.f32 %v1664, %v1666
    %v1668 = vadd.f32 %v1664, %v1667
    %vm1669 = vweird.f32 %v1663
    %vm1670 = vweird.f32 %v1664
    %vm1671 = vmor %vm1669, %vm1670
    %v1672 = vsel %vm1671, %v1664, %v1668
    %v1673 = vand.u32 2147483647, %v1663
    %vm1674 = vcmp.eq.f32.partialorder %v1673, 8.507059e+37
    %v1675 = vand.u32 %v1663, 2147483648
    %v1676 = vor.u32 1.1754944e-38, %v1675
    %v1677 = vsel %vm1674, %v1676, %v1672
    %v1678 = vmul.f32 1.0, %v1677
    %v1679 = vtanh.pop %v1659
    %v1680 = vmul.f32 %v1678, %v1534
    %1682 = vrot.lane.b32.xlu0 %v1679, 96
    %v1683 = vpop.permute.xlu0 %1682
    %v1685 = vmul.f32 %v1678, %v1683
    %1687 = vrot.lane.b32.xlu0 %v1685, 16
    %v1688 = vpop.permute.xlu0 %1687
    %v1690 = vadd.f32 %v1680, %v1688
    %v1691 = vtanh.pop %v1690
    %1693 = vrot.lane.b32.xlu0 %v1691, 32
    %v1694 = vpop.permute.xlu0 %1693
    %v1696 = vmul.f32 %v1678, %v1694
    %1698 = vrot.lane.b32.xlu0 %v1696, 80
    %v1699 = vpop.permute.xlu0 %1698
    %v1700 = vsel %vm358, %v1699, 0
    %1702 = vmatpush.xpose.msra.mxu0 0.0
    %1703 = vmatpush.xpose.msra.mxu0 0.0
    %1704 = vmatpush.xpose.msra.mxu0 0.0
    %1705 = vmatpush.xpose.msra.mxu0 0.0
    %1706 = vmatpush.xpose.msra.mxu0 0.0
    %1707 = vmatpush.xpose.msra.mxu0 0.0
    %1708 = vmatpush.xpose.msra.mxu0 0.0
    %1709 = vmatpush.xpose.msra.mxu0 0.0
    %1710 = vmatpush.xpose.msra.mxu0 0.0
    %1711 = vmatpush.xpose.msra.mxu0 0.0
    %1712 = vmatpush.xpose.msra.mxu0 0.0
    %1713 = vmatpush.xpose.msra.mxu0 0.0
    %1714 = vmatpush.xpose.msra.mxu0 0.0
    %1715 = vmatpush.xpose.msra.mxu0 0.0
    %1716 = vmatpush.xpose.msra.mxu0 %v1384
    %1717 = vmatpush.xpose.msra.mxu0 %v1382
    %1718 = vmatmul.f32.gmra.mxu0 %v1700
    %v1719 = vpop.f32.mrf.mxu0
    %v1720 = vadd.f32 0.0, %v1719
    %1721 = vdwg.mxu0
    %v1722 = vsel %vm1286, %v1720, -1e+30
    %v1723 = vsel %vm1407, %v1722, -inf
    %1724 = vmax.xlane.f32.xlu0 %v1723
    %v1725 = vpop.xlane.xlu0 %1724
    %v1726 = vsub.f32 %v1722, %v1725
    %v1727 = vmul.f32 %v1726, 1.442695
    %v1728 = vpow.pop %v1727
    %v1729 = vmul.f32 %v1728, %v92
    %v1730 = vsel %vm1407, %v1729, 0.0
    %1731 = vadd.xlane.f32.xlu0 %v1730
    %v1732 = vpop.xlane.xlu0 %1731
    %v1733 = vmax.f32 %v1732, 1e-20
    %v1734 = vrcp.pop %v1733
    %v1735 = vmul.f32 %v1733, %v1734
    %v1736 = vsub.f32 1.0, %v1735
    %v1737 = vmul.f32 %v1734, %v1736
    %v1738 = vadd.f32 %v1734, %v1737
    %vm1739 = vweird.f32 %v1733
    %vm1740 = vweird.f32 %v1734
    %vm1741 = vmor %vm1739, %vm1740
    %v1742 = vsel %vm1741, %v1734, %v1738
    %v1743 = vand.u32 2147483647, %v1733
    %vm1744 = vcmp.eq.f32.partialorder %v1743, 8.507059e+37
    %v1745 = vand.u32 %v1733, 2147483648
    %v1746 = vor.u32 1.1754944e-38, %v1745
    %v1747 = vsel %vm1744, %v1746, %v1742
    %v1748 = vmul.f32 %v1729, %v1747
    %v1750 = vsel %vm318, %v1748, 0
    %1752 = vmatpush.msra.mxu0 0.0
    %1753 = vmatpush.msra.mxu0 0.0
    %1754 = vmatpush.msra.mxu0 0.0
    %1755 = vmatpush.msra.mxu0 0.0
    %1756 = vmatpush.msra.mxu0 0.0
    %1757 = vmatpush.msra.mxu0 0.0
    %1758 = vmatpush.msra.mxu0 0.0
    %1759 = vmatpush.msra.mxu0 0.0
    %1760 = vmatpush.msra.mxu0 0.0
    %1761 = vmatpush.msra.mxu0 0.0
    %1762 = vmatpush.msra.mxu0 0.0
    %1763 = vmatpush.msra.mxu0 0.0
    %1764 = vmatpush.msra.mxu0 0.0
    %1765 = vmatpush.msra.mxu0 0.0
    %1766 = vmatpush.msra.mxu0 %v1438
    %1767 = vmatpush.msra.mxu0 %v1377
    %1768 = vmatmul.f32.gmra.mxu0 %v1750
    %v1769 = vpop.f32.mrf.mxu0
    %v1770 = vadd.f32 0.0, %v1769
    %1771 = vdwg.mxu0
    %1774 = vrot.lane.b32.xlu0 %v1770, 16
    %v1775 = vpop.permute.xlu0 %1774
    %v1777 = vsel %vm358, %v1699, %v1775
    %vm1778 = vcmask 261120
    %v1779 = vsel %vm1778, %v1777, 0.0
    %1780 = vst [vmem:[#allocation5] sm:$0x3] %v1779
    %v1782 = vsel %vm358, %v1377, 0.0
    %v1783 = vsel %vm358, %v1379, 0.0
    %1784 = vst [vmem:[#allocation6] sm:$0xff] %v1782
    %1785 = vst [vmem:[#allocation6 + $0x8] sm:$0xf] %v1783
    // Predicated region
    $region82: #{sup_encoder_forward.1} parent=1 // pred_check
      _
    $region83: #{sup_encoder_forward.1} parent=1 // pred_check_branch
      %1787 = sbr.rel (0) target = $region85
    $region84: #{sup_encoder_forward.1} parent=1 // pred_region
      %1789 = vsyncadd [#allocation4], 0
      %s1791 = sshll.u32 [#allocation5], 4
      %s1792 = int_to_ptr.vmem [resolvable:$true] %s1791
      %s1793 = sshll.u32 %s19, 4
      %s1794 = int_to_ptr.hbm [resolvable:$true] %s1793
      %1796 = dma.vmem_to_hbm [thread:$0]  %s1792, 32, %s1794, [#allocation4]
    $region85: #{sup_encoder_forward.1} parent=1 // pred_fallthru
      _
    // Predicated region
    $region86: #{sup_encoder_forward.1} parent=1 // pred_check
      _
    $region87: #{sup_encoder_forward.1} parent=1 // pred_check_branch
      %1798 = sbr.rel (0) target = $region89
    $region88: #{sup_encoder_forward.1} parent=1 // pred_region
      %1800 = vsyncadd [#allocation7], 0
      %s1801 = sshll.u32 [#allocation6], 4
      %s1802 = int_to_ptr.vmem [resolvable:$true] %s1801
      %s1803 = sshll.u32 %s20, 4
      %s1804 = int_to_ptr.hbm [resolvable:$true] %s1803
      %1809 = dma.vmem_to_hbm [thread:$0]  %s1802, 256, %s1804, [#allocation7], 128, 128, 8
    $region89: #{sup_encoder_forward.1} parent=1 // pred_fallthru
      _
    // Predicated region
    $region90: #{sup_encoder_forward.1} parent=1 // pred_check
      _
    $region91: #{sup_encoder_forward.1} parent=1 // pred_check_branch
      %1811 = sbr.rel (0) target = $region93
    $region92: #{sup_encoder_forward.1} parent=1 // pred_region
      %1813 = dma.done [#allocation4], 32
    $region93: #{sup_encoder_forward.1} parent=1 // pred_fallthru
      _
    // Predicated region
    $region94: #{sup_encoder_forward.1} parent=1 // pred_check
      _
    $region95: #{sup_encoder_forward.1} parent=1 // pred_check_branch
      %1815 = sbr.rel (0) target = $region97
    $region96: #{sup_encoder_forward.1} parent=1 // pred_region
      %1817 = dma.done [#allocation7], 256
    $region97: #{sup_encoder_forward.1} parent=1 // pred_fallthru
      _
    %1818 = vsyncpa [#allocation3], 1
    %1819 = vsyncpa [#allocation4], 1
    %1820 = vsyncpa [#allocation7], 1

</llo_original>
